<compile_context>
chip_gen: v7x
topology: tpu7x:2x2x1
jax: 0.10.0
libtpu: 0.0.40
codegen_flags: <defaults>
</compile_context>

<pallas_src>
import functools
import numpy as np
import jax
import jax.numpy as jnp
from jax.experimental import pallas as pl
from jax.experimental.pallas import tpu as pltpu

LANE = 128     # last-dim (lane) alignment target for FC widths / final output
SUBLANE = 8    # second-to-last-dim (sublane) alignment target


def _round_up(n, m):
    return ((n + m - 1) // m) * m


# ----------------------------------------------------------------------------
# Pallas kernels
# ----------------------------------------------------------------------------
def _conv_matmul_kernel(x_ref, w_ref, shift_ref, o_ref):
    """o = relu(x @ w + shift); shift folds conv bias + eval-mode BN."""
    acc = jnp.dot(x_ref[...], w_ref[...], preferred_element_type=jnp.float32)
    o_ref[...] = jnp.maximum(acc + shift_ref[...], 0.0).astype(o_ref.dtype)


def conv_matmul_bn_relu(x, w, shift):
    """Single-block im2col-matmul + folded-BN shift + ReLU (conv1)."""
    M, K = x.shape
    Kw, N = w.shape
    assert K == Kw, (K, Kw)
    isz = x.dtype.itemsize
    cost = pl.CostEstimate(
        flops=2 * M * K * N, transcendentals=0,
        bytes_accessed=isz * (M * K + K * N + M * N) + 4 * N)
    return pl.pallas_call(
        _conv_matmul_kernel,
        out_shape=jax.ShapeDtypeStruct((M, N), x.dtype),   # store in compute dtype
        grid=(1,),
        in_specs=[
            pl.BlockSpec((M, K), lambda i: (0, 0)),
            pl.BlockSpec((K, N), lambda i: (0, 0)),
            pl.BlockSpec((1, N), lambda i: (0, 0)),
        ],
        out_specs=pl.BlockSpec((M, N), lambda i: (0, 0)),
        compiler_params=pltpu.CompilerParams(
            dimension_semantics=("arbitrary",)),
        cost_estimate=cost,
    )(x, w, shift)


def _conv2_fc_fused_kernel(p2_ref, w2_ref, s2_ref, wf1_ref, bf1_ref,
                           wf2_ref, bf2_ref, wf3_ref, bf3_ref, o_ref, *,
                           n_pos):
    """out = (relu(relu(conv2)@Wfc1+b1)@Wfc2+b2 relu)@Wfc3+b3.

    conv2 + bn2 + relu is computed per output spatial position p and consumed
    directly by fc1 as a sum of per-position matmuls (Wfc1 was pre-permuted to
    (pos, C2, N1) at init), so no reshape/transpose is needed in-kernel.
    Dropout layers are eval-mode identities.
    """
    mdt = w2_ref.dtype                                   # MXU input dtype
    acc = jnp.zeros((p2_ref.shape[1], wf1_ref.shape[2]), jnp.float32)
    for p in range(n_pos):                               # static unroll (small)
        c = jnp.dot(p2_ref[p], w2_ref[...],
                    preferred_element_type=jnp.float32)  # (Bp, C2)
        c = jnp.maximum(c + s2_ref[...], 0.0)            # bn2 shift + relu
        acc = acc + jnp.dot(c.astype(mdt), wf1_ref[p],
                            preferred_element_type=jnp.float32)
    h = jnp.maximum(acc + bf1_ref[...], 0.0)             # fc1 bias + relu
    h = jnp.dot(h.astype(mdt), wf2_ref[...],
                preferred_element_type=jnp.float32)
    h = jnp.maximum(h + bf2_ref[...], 0.0)               # fc2 bias + relu
    out = jnp.dot(h.astype(mdt), wf3_ref[...],
                  preferred_element_type=jnp.float32) + bf3_ref[...]
    o_ref[...] = out.astype(o_ref.dtype)


def conv2_fc_fused(p2, w2, s2, wf1, bf1, wf2, bf2, wf3, bf3):
    P, Bp, K2 = p2.shape
    C2 = w2.shape[1]
    N1 = wf1.shape[2]
    N2 = wf2.shape[1]
    N3 = wf3.shape[1]
    isz = p2.dtype.itemsize
    flops = 2 * (P * Bp * K2 * C2 + P * Bp * C2 * N1
                 + Bp * N1 * N2 + Bp * N2 * N3)
    bytes_accessed = (isz * (P * Bp * K2 + K2 * C2 + P * C2 * N1
                             + N1 * N2 + N2 * N3)
                      + 4 * (C2 + N1 + N2 + N3 + Bp * N3))
    cost = pl.CostEstimate(flops=flops, transcendentals=0,
                           bytes_accessed=bytes_accessed)

    def blk(shape):
        return pl.BlockSpec(shape, lambda i, _n=len(shape): (0,) * _n)

    return pl.pallas_call(
        functools.partial(_conv2_fc_fused_kernel, n_pos=P),
        out_shape=jax.ShapeDtypeStruct((Bp, N3), jnp.float32),
        grid=(1,),
        in_specs=[blk(p2.shape), blk(w2.shape), blk(s2.shape),
                  blk(wf1.shape), blk(bf1.shape), blk(wf2.shape),
                  blk(bf2.shape), blk(wf3.shape), blk(bf3.shape)],
        out_specs=blk((Bp, N3)),
        compiler_params=pltpu.CompilerParams(
            dimension_semantics=("arbitrary",)),
        cost_estimate=cost,
    )(p2, w2, s2, wf1, bf1, wf2, bf2, wf3, bf3)


# ----------------------------------------------------------------------------
# Plain-JAX glue (all inside jit, all static slices / reshapes on tiny arrays)
# ----------------------------------------------------------------------------
def conv3D_output_size(img_size, padding, kernel_size, stride):
    return tuple(
        int(np.floor((img_size[i] + 2 * padding[i] - kernel_size[i])
                     / stride[i] + 1))
        for i in range(3))


def im2col_3d_cl(x_cl, kernel, stride):
    """Channels-last im2col via static strided slices (no gather).

    x_cl: (B, D, H, W, C) -> (B*Do*Ho*Wo, kd*kh*kw*C).
    Column order is (di, hi, wi, c), matching the weight layout built at init.
    """
    B, D, H, W, C = x_cl.shape
    kd, kh, kw = kernel
    sd, sh, sw = stride
    Do = (D - kd) // sd + 1
    Ho = (H - kh) // sh + 1
    Wo = (W - kw) // sw + 1
    cols = []
    for di in range(kd):
        for hi in range(kh):
            for wi in range(kw):
                cols.append(x_cl[:,
                                 di:di + (Do - 1) * sd + 1:sd,
                                 hi:hi + (Ho - 1) * sh + 1:sh,
                                 wi:wi + (Wo - 1) * sw + 1:sw, :])
    patches = jnp.stack(cols, axis=4)               # (B,Do,Ho,Wo,kd*kh*kw,C)
    return patches.reshape(B * Do * Ho * Wo, kd * kh * kw * C), (Do, Ho, Wo)


def _fold_conv_bn(w, b, bn, *, dtype):
    """Fold conv bias + eval-mode BatchNorm into (W_mat, shift).

    Returns W_mat of shape (round_up(kd*kh*kw*cin, 8), cout) with row order
    (di, hi, wi, cin) matching im2col_3d_cl, and shift (1, cout).  No lane
    padding of the output channels: true channel counts flow downstream.
    """
    gamma, beta, rmean, rvar, eps = bn
    scale = gamma / jnp.sqrt(rvar + eps)            # (Cout,)
    shift = (b - rmean) * scale + beta              # (Cout,)
    cout, cin, kd, kh, kw = w.shape
    w_mat = jnp.transpose(w, (2, 3, 4, 1, 0)).reshape(kd * kh * kw * cin, cout)
    w_mat = w_mat * scale[None, :]                  # fold BN scale into W
    k = w_mat.shape[0]
    k_pad = _round_up(k, SUBLANE)
    w_mat = jnp.pad(w_mat, ((0, k_pad - k), (0, 0)))
    return w_mat.astype(dtype), shift.reshape(1, cout).astype(jnp.float32)


# ----------------------------------------------------------------------------
# CNN3D model (eval-mode forward)
# ----------------------------------------------------------------------------
class CNN3DPallas:
    def __init__(self, key, hidden_dim=(8, 16),
                 kernel_size=((5, 5, 5), (3, 3, 3)), t_dim=10, img_x=16,
                 img_y=16, drop_p=0.2, fc_hidden=64, output_dim=5,
                 compute_dtype=jnp.bfloat16):
        # compute_dtype: MXU input dtype (bf16 is native on v5e/v6e/v7x MXUs);
        # accumulation and all bias/BN/ReLU epilogues are always f32.
        self.ch1, self.ch2 = hidden_dim
        self.k1, self.k2 = kernel_size
        self.s1 = self.s2 = (2, 2, 2)
        self.pd1 = self.pd2 = (0, 0, 0)
        self.output_dim = output_dim
        self.compute_dtype = compute_dtype
        self.conv1_outshape = conv3D_output_size((t_dim, img_x, img_y),
                                                 self.pd1, self.k1, self.s1)
        self.conv2_outshape = conv3D_output_size(self.conv1_outshape,
                                                 self.pd2, self.k2, self.s2)
        D2, H2, W2 = self.conv2_outshape
        self.n_pos = D2 * H2 * W2
        flat = self.ch2 * self.n_pos

        # Lane-padded FC widths (full-lane vregs through the FC chain; padded
        # cols are zero and the next weight's padded rows are zero).
        n1_pad = _round_up(fc_hidden, LANE)
        n2_pad = _round_up(fc_hidden // 2, LANE)
        n3_pad = _round_up(output_dim, LANE)

        # ---------------- raw parameters (deterministic init) ----------------
        ks = jax.random.split(key, 13)

        def rnd(k, shape, s=0.05):
            return jax.random.normal(k, shape, jnp.float32) * s

        w_conv1 = rnd(ks[0], (self.ch1, 1) + self.k1)
        b_conv1 = rnd(ks[1], (self.ch1,))
        w_conv2 = rnd(ks[2], (self.ch2, self.ch1) + self.k2)
        b_conv2 = rnd(ks[3], (self.ch2,))
        eps = 1e-5
        bn1 = (1.0 + rnd(ks[4], (self.ch1,)), rnd(ks[5], (self.ch1,)),
               rnd(ks[6], (self.ch1,)),
               0.5 + jax.random.uniform(ks[7], (self.ch1,), jnp.float32), eps)
        bn2 = (1.0 + rnd(ks[8], (self.ch2,)), rnd(ks[9], (self.ch2,)),
               rnd(ks[10], (self.ch2,)),
               0.5 + jax.random.uniform(ks[11], (self.ch2,), jnp.float32), eps)
        ks2 = jax.random.split(ks[12], 6)
        w_fc1 = rnd(ks2[0], (fc_hidden, flat))
        b_fc1 = rnd(ks2[1], (fc_hidden,))
        w_fc2 = rnd(ks2[2], (fc_hidden // 2, fc_hidden))
        b_fc2 = rnd(ks2[3], (fc_hidden // 2,))
        w_fc3 = rnd(ks2[4], (output_dim, fc_hidden // 2))
        b_fc3 = rnd(ks2[5], (output_dim,))

        # --------- one-time host-side folding / permutation / padding --------
        self.w1_mat, self.shift1 = _fold_conv_bn(w_conv1, b_conv1, bn1,
                                                 dtype=compute_dtype)
        self.w2_mat, self.shift2 = _fold_conv_bn(w_conv2, b_conv2, bn2,
                                                 dtype=compute_dtype)

        # fc1 weight regrouped as (pos, C2, N1): the fused kernel computes
        #   fc1_pre = sum_p conv2_out[:, p, :] @ wf1[p]
        # which reproduces PyTorch's x.view(B,-1) ordering (flat index
        # f = c*D2*H2*W2 + p) with no runtime transpose/reshape.
        wt = w_fc1.T.reshape(self.ch2, D2, H2, W2, fc_hidden)
        wt = jnp.transpose(wt, (1, 2, 3, 0, 4)).reshape(self.n_pos, self.ch2,
                                                        fc_hidden)
        self.w_fc1_mat = jnp.pad(
            wt, ((0, 0), (0, 0), (0, n1_pad - fc_hidden))).astype(compute_dtype)
        self.b_fc1_row = jnp.pad(
            b_fc1, (0, n1_pad - fc_hidden)).reshape(1, -1).astype(jnp.float32)
        self.w_fc2_mat = jnp.pad(
            w_fc2.T, ((0, n1_pad - fc_hidden),
                      (0, n2_pad - fc_hidden // 2))).astype(compute_dtype)
        self.b_fc2_row = jnp.pad(
            b_fc2, (0, n2_pad - fc_hidden // 2)
        ).reshape(1, -1).astype(jnp.float32)
        self.w_fc3_mat = jnp.pad(
            w_fc3.T, ((0, n2_pad - fc_hidden // 2),
                      (0, n3_pad - output_dim))).astype(compute_dtype)
        self.b_fc3_row = jnp.pad(
            b_fc3, (0, n3_pad - output_dim)).reshape(1, -1).astype(jnp.float32)

        self._jit_forward = jax.jit(self._forward_impl)

    # ------------------------------------------------------------------ fwd
    def _forward_impl(self, x_3d):
        # x_3d: (B, 1, T, H, W) NCDHW, like PyTorch.
        B = x_3d.shape[0]
        dt = self.compute_dtype
        x = jnp.transpose(x_3d, (0, 2, 3, 4, 1)).astype(dt)   # channels-last

        # ---- conv1 + bn1 + relu (Dropout3d = identity in eval) --------------
        p1, _ = im2col_3d_cl(x, self.k1, self.s1)             # (B*M1, 125)
        k1_pad = self.w1_mat.shape[0]
        if p1.shape[1] != k1_pad:                             # K -> mult of 8
            p1 = jnp.pad(p1, ((0, 0), (0, k1_pad - p1.shape[1])))
        m1 = p1.shape[0]
        m1_pad = _round_up(m1, SUBLANE)
        if m1_pad != m1:
            p1 = jnp.pad(p1, ((0, m1_pad - m1), (0, 0)))
        y1 = conv_matmul_bn_relu(p1, self.w1_mat, self.shift1)  # (m1_pad, ch1)
        D1, H1, W1 = self.conv1_outshape
        y1 = y1[:m1].reshape(B, D1, H1, W1, self.ch1)

        # ---- conv2 im2col on a ~3.4 KB activation (static XLA slices) -------
        p2, _ = im2col_3d_cl(y1, self.k2, self.s2)            # (B*P, 27*ch1)
        k2_pad = self.w2_mat.shape[0]
        if p2.shape[1] != k2_pad:
            p2 = jnp.pad(p2, ((0, 0), (0, k2_pad - p2.shape[1])))
        p2 = p2.reshape(B, self.n_pos, k2_pad).transpose(1, 0, 2)  # (P,B,K2)
        b_pad = _round_up(B, SUBLANE)
        if b_pad != B:
            p2 = jnp.pad(p2, ((0, 0), (0, b_pad - B), (0, 0)))

        # ---- conv2+bn2+relu + fc1+relu + fc2+relu + fc3: ONE pallas_call ----
        out = conv2_fc_fused(p2, self.w2_mat, self.shift2,
                             self.w_fc1_mat, self.b_fc1_row,
                             self.w_fc2_mat, self.b_fc2_row,
                             self.w_fc3_mat, self.b_fc3_row)
        return out[:B, :self.output_dim]

    def __call__(self, x_3d):
        return self._jit_forward(x_3d)


if __name__ == "__main__":
    key = jax.random.PRNGKey(0)
    k_param, k_input = jax.random.split(key)

    B, t_dim, img_x, img_y = 2, 10, 16, 16
    model = CNN3DPallas(k_param, hidden_dim=(8, 16), t_dim=t_dim,
                        img_x=img_x, img_y=img_y, fc_hidden=64, output_dim=5)

    x = jax.random.normal(k_input, (B, 1, t_dim, img_x, img_y), jnp.float32)

    out = model(x)
    out = jax.block_until_ready(out)
    assert out.shape == (B, 5), out.shape
    assert bool(jnp.all(jnp.isfinite(out))), "non-finite output"
    print("KERNEL_OK")
</pallas_src>

<mosaic_0001>
module attributes {stable_mosaic.version = 11 : i64} {
  func.func @_conv_matmul_kernel(%arg0: i32, %arg1: memref<216x128xbf16, #tpu.memory_space<vmem>>, %arg2: memref<128x8xbf16, #tpu.memory_space<vmem>>, %arg3: memref<1x8xf32, #tpu.memory_space<vmem>>, %arg4: memref<216x8xbf16, #tpu.memory_space<vmem>>) attributes {dimension_semantics = [#tpu.dimension_semantics<arbitrary>], iteration_bounds = array<i64: 1>, scalar_prefetch = 0 : i64, scratch_operands = 0 : i64, tpu.core_type = #tpu.core_type<tc>, window_params = [{pipeline_mode = #tpu.pipeline_mode<synchronous>, transform_indices = @transform_0, window_bounds = array<i64: 216, 128>}, {pipeline_mode = #tpu.pipeline_mode<synchronous>, transform_indices = @transform_1, window_bounds = array<i64: 128, 8>}, {pipeline_mode = #tpu.pipeline_mode<synchronous>, transform_indices = @transform_2, window_bounds = array<i64: 1, 8>}, {pipeline_mode = #tpu.pipeline_mode<synchronous>, transform_indices = @transform_3, window_bounds = array<i64: 216, 8>}]} {
    %c0 = arith.constant 0 : index
    %c0_0 = arith.constant 0 : index
    %0 = vector.load %arg1[%c0, %c0_0] : memref<216x128xbf16, #tpu.memory_space<vmem>>, vector<216x128xbf16>
    %c0_1 = arith.constant 0 : index
    %c0_2 = arith.constant 0 : index
    %1 = vector.load %arg2[%c0_1, %c0_2] : memref<128x8xbf16, #tpu.memory_space<vmem>>, vector<128x8xbf16>
    %cst = arith.constant dense<0.000000e+00> : vector<216x8xf32>
    %2 = tpu.matmul %0, %1, %cst {dimension_numbers = #tpu.dot_dimension_numbers<[1], [0], [0], [1], [0, 0, 1, 1], [], []>} : vector<216x128xbf16>, vector<128x8xbf16>, vector<216x8xf32> -> vector<216x8xf32>
    %c0_3 = arith.constant 0 : index
    %c0_4 = arith.constant 0 : index
    %3 = vector.load %arg3[%c0_3, %c0_4] : memref<1x8xf32, #tpu.memory_space<vmem>>, vector<1x8xf32>
    %4 = vector.broadcast %3 : vector<1x8xf32> to vector<216x8xf32>
    %5 = arith.addf %2, %4 : vector<216x8xf32>
    %cst_5 = arith.constant 0.000000e+00 : f32
    %6 = vector.broadcast %cst_5 : f32 to vector<216x8xf32>
    %7 = arith.maximumf %5, %6 : vector<216x8xf32>
    %8 = arith.truncf %7 : vector<216x8xf32> to vector<216x8xbf16>
    %c0_6 = arith.constant 0 : index
    %c0_7 = arith.constant 0 : index
    %9 = vector.load %arg4[%c0_6, %c0_7] : memref<216x8xbf16, #tpu.memory_space<vmem>>, vector<216x8xbf16>
    tpu.vector_store %arg4[%c0_6, %c0_7], %8 {strides = array<i32>} : memref<216x8xbf16, #tpu.memory_space<vmem>>, vector<216x8xbf16>,
    return
  }
  func.func @transform_0(%arg0: i32) -> (i32, i32) {
    %c0_i32 = arith.constant 0 : i32
    %c0_i32_0 = arith.constant 0 : i32
    %c0_i32_1 = arith.constant 0 : i32
    return %c0_i32, %c0_i32_0 : i32, i32
  }
  func.func @transform_1(%arg0: i32) -> (i32, i32) {
    %c0_i32 = arith.constant 0 : i32
    %c0_i32_0 = arith.constant 0 : i32
    %c0_i32_1 = arith.constant 0 : i32
    return %c0_i32, %c0_i32_0 : i32, i32
  }
  func.func @transform_2(%arg0: i32) -> (i32, i32) {
    %c0_i32 = arith.constant 0 : i32
    %c0_i32_0 = arith.constant 0 : i32
    %c0_i32_1 = arith.constant 0 : i32
    return %c0_i32, %c0_i32_0 : i32, i32
  }
  func.func @transform_3(%arg0: i32) -> (i32, i32) {
    %c0_i32 = arith.constant 0 : i32
    %c0_i32_0 = arith.constant 0 : i32
    %c0_i32_1 = arith.constant 0 : i32
    return %c0_i32, %c0_i32_0 : i32, i32
  }
}

module attributes {stable_mosaic.version = 11 : i64} {
  func.func @_conv2_fc_fused_kernel(%arg0: i32, %arg1: memref<4x8x216xbf16, #tpu.memory_space<vmem>>, %arg2: memref<216x16xbf16, #tpu.memory_space<vmem>>, %arg3: memref<1x16xf32, #tpu.memory_space<vmem>>, %arg4: memref<4x16x128xbf16, #tpu.memory_space<vmem>>, %arg5: memref<1x128xf32, #tpu.memory_space<vmem>>, %arg6: memref<128x128xbf16, #tpu.memory_space<vmem>>, %arg7: memref<1x128xf32, #tpu.memory_space<vmem>>, %arg8: memref<128x128xbf16, #tpu.memory_space<vmem>>, %arg9: memref<1x128xf32, #tpu.memory_space<vmem>>, %arg10: memref<8x128xf32, #tpu.memory_space<vmem>>) attributes {dimension_semantics = [#tpu.dimension_semantics<arbitrary>], iteration_bounds = array<i64: 1>, scalar_prefetch = 0 : i64, scratch_operands = 0 : i64, tpu.core_type = #tpu.core_type<tc>, window_params = [{pipeline_mode = #tpu.pipeline_mode<synchronous>, transform_indices = @transform_0, window_bounds = array<i64: 4, 8, 216>}, {pipeline_mode = #tpu.pipeline_mode<synchronous>, transform_indices = @transform_1, window_bounds = array<i64: 216, 16>}, {pipeline_mode = #tpu.pipeline_mode<synchronous>, transform_indices = @transform_2, window_bounds = array<i64: 1, 16>}, {pipeline_mode = #tpu.pipeline_mode<synchronous>, transform_indices = @transform_3, window_bounds = array<i64: 4, 16, 128>}, {pipeline_mode = #tpu.pipeline_mode<synchronous>, transform_indices = @transform_4, window_bounds = array<i64: 1, 128>}, {pipeline_mode = #tpu.pipeline_mode<synchronous>, transform_indices = @transform_5, window_bounds = array<i64: 128, 128>}, {pipeline_mode = #tpu.pipeline_mode<synchronous>, transform_indices = @transform_6, window_bounds = array<i64: 1, 128>}, {pipeline_mode = #tpu.pipeline_mode<synchronous>, transform_indices = @transform_7, window_bounds = array<i64: 128, 128>}, {pipeline_mode = #tpu.pipeline_mode<synchronous>, transform_indices = @transform_8, window_bounds = array<i64: 1, 128>}, {pipeline_mode = #tpu.pipeline_mode<synchronous>, transform_indices = @transform_9, window_bounds = array<i64: 8, 128>}]} {
    %cst = arith.constant 0.000000e+00 : f32
    %0 = vector.broadcast %cst : f32 to vector<8x128xf32>
    %c0 = arith.constant 0 : index
    %c0_0 = arith.constant 0 : index
    %c0_1 = arith.constant 0 : index
    %1 = vector.load %arg1[%c0, %c0_0, %c0_1] : memref<4x8x216xbf16, #tpu.memory_space<vmem>>, vector<1x8x216xbf16>
    %2 = vector.shape_cast %1 : vector<1x8x216xbf16> to vector<8x216xbf16>
    %c0_2 = arith.constant 0 : index
    %c0_3 = arith.constant 0 : index
    %3 = vector.load %arg2[%c0_2, %c0_3] : memref<216x16xbf16, #tpu.memory_space<vmem>>, vector<216x16xbf16>
    %cst_4 = arith.constant dense<0.000000e+00> : vector<8x16xf32>
    %4 = tpu.matmul %2, %3, %cst_4 {dimension_numbers = #tpu.dot_dimension_numbers<[1], [0], [0], [1], [0, 0, 1, 1], [], []>} : vector<8x216xbf16>, vector<216x16xbf16>, vector<8x16xf32> -> vector<8x16xf32>
    %c0_5 = arith.constant 0 : index
    %c0_6 = arith.constant 0 : index
    %5 = vector.load %arg3[%c0_5, %c0_6] : memref<1x16xf32, #tpu.memory_space<vmem>>, vector<1x16xf32>
    %6 = vector.broadcast %5 : vector<1x16xf32> to vector<8x16xf32>
    %7 = arith.addf %4, %6 : vector<8x16xf32>
    %cst_7 = arith.constant 0.000000e+00 : f32
    %8 = vector.broadcast %cst_7 : f32 to vector<8x16xf32>
    %9 = arith.maximumf %7, %8 : vector<8x16xf32>
    %10 = arith.truncf %9 : vector<8x16xf32> to vector<8x16xbf16>
    %c0_8 = arith.constant 0 : index
    %c0_9 = arith.constant 0 : index
    %c0_10 = arith.constant 0 : index
    %11 = vector.load %arg4[%c0_8, %c0_9, %c0_10] : memref<4x16x128xbf16, #tpu.memory_space<vmem>>, vector<1x16x128xbf16>
    %12 = vector.shape_cast %11 : vector<1x16x128xbf16> to vector<16x128xbf16>
    %cst_11 = arith.constant dense<0.000000e+00> : vector<8x128xf32>
    %13 = tpu.matmul %10, %12, %cst_11 {dimension_numbers = #tpu.dot_dimension_numbers<[1], [0], [0], [1], [0, 0, 1, 1], [], []>} : vector<8x16xbf16>, vector<16x128xbf16>, vector<8x128xf32> -> vector<8x128xf32>
    %14 = arith.addf %0, %13 : vector<8x128xf32>
    %c1 = arith.constant 1 : index
    %c0_12 = arith.constant 0 : index
    %c0_13 = arith.constant 0 : index
    %15 = vector.load %arg1[%c1, %c0_12, %c0_13] : memref<4x8x216xbf16, #tpu.memory_space<vmem>>, vector<1x8x216xbf16>
    %16 = vector.shape_cast %15 : vector<1x8x216xbf16> to vector<8x216xbf16>
    %c0_14 = arith.constant 0 : index
    %c0_15 = arith.constant 0 : index
    %17 = vector.load %arg2[%c0_14, %c0_15] : memref<216x16xbf16, #tpu.memory_space<vmem>>, vector<216x16xbf16>
    %cst_16 = arith.constant dense<0.000000e+00> : vector<8x16xf32>
    %18 = tpu.matmul %16, %17, %cst_16 {dimension_numbers = #tpu.dot_dimension_numbers<[1], [0], [0], [1], [0, 0, 1, 1], [], []>} : vector<8x216xbf16>, vector<216x16xbf16>, vector<8x16xf32> -> vector<8x16xf32>
    %c0_17 = arith.constant 0 : index
    %c0_18 = arith.constant 0 : index
    %19 = vector.load %arg3[%c0_17, %c0_18] : memref<1x16xf32, #tpu.memory_space<vmem>>, vector<1x16xf32>
    %20 = vector.broadcast %19 : vector<1x16xf32> to vector<8x16xf32>
    %21 = arith.addf %18, %20 : vector<8x16xf32>
    %cst_19 = arith.constant 0.000000e+00 : f32
    %22 = vector.broadcast %cst_19 : f32 to vector<8x16xf32>
    %23 = arith.maximumf %21, %22 : vector<8x16xf32>
    %24 = arith.truncf %23 : vector<8x16xf32> to vector<8x16xbf16>
    %c1_20 = arith.constant 1 : index
    %c0_21 = arith.constant 0 : index
    %c0_22 = arith.constant 0 : index
    %25 = vector.load %arg4[%c1_20, %c0_21, %c0_22] : memref<4x16x128xbf16, #tpu.memory_space<vmem>>, vector<1x16x128xbf16>
    %26 = vector.shape_cast %25 : vector<1x16x128xbf16> to vector<16x128xbf16>
    %cst_23 = arith.constant dense<0.000000e+00> : vector<8x128xf32>
    %27 = tpu.matmul %24, %26, %cst_23 {dimension_numbers = #tpu.dot_dimension_numbers<[1], [0], [0], [1], [0, 0, 1, 1], [], []>} : vector<8x16xbf16>, vector<16x128xbf16>, vector<8x128xf32> -> vector<8x128xf32>
    %28 = arith.addf %14, %27 : vector<8x128xf32>
    %c2 = arith.constant 2 : index
    %c0_24 = arith.constant 0 : index
    %c0_25 = arith.constant 0 : index
    %29 = vector.load %arg1[%c2, %c0_24, %c0_25] : memref<4x8x216xbf16, #tpu.memory_space<vmem>>, vector<1x8x216xbf16>
    %30 = vector.shape_cast %29 : vector<1x8x216xbf16> to vector<8x216xbf16>
    %c0_26 = arith.constant 0 : index
    %c0_27 = arith.constant 0 : index
    %31 = vector.load %arg2[%c0_26, %c0_27] : memref<216x16xbf16, #tpu.memory_space<vmem>>, vector<216x16xbf16>
    %cst_28 = arith.constant dense<0.000000e+00> : vector<8x16xf32>
    %32 = tpu.matmul %30, %31, %cst_28 {dimension_numbers = #tpu.dot_dimension_numbers<[1], [0], [0], [1], [0, 0, 1, 1], [], []>} : vector<8x216xbf16>, vector<216x16xbf16>, vector<8x16xf32> -> vector<8x16xf32>
    %c0_29 = arith.constant 0 : index
    %c0_30 = arith.constant 0 : index
    %33 = vector.load %arg3[%c0_29, %c0_30] : memref<1x16xf32, #tpu.memory_space<vmem>>, vector<1x16xf32>
    %34 = vector.broadcast %33 : vector<1x16xf32> to vector<8x16xf32>
    %35 = arith.addf %32, %34 : vector<8x16xf32>
    %cst_31 = arith.constant 0.000000e+00 : f32
    %36 = vector.broadcast %cst_31 : f32 to vector<8x16xf32>
    %37 = arith.maximumf %35, %36 : vector<8x16xf32>
    %38 = arith.truncf %37 : vector<8x16xf32> to vector<8x16xbf16>
    %c2_32 = arith.constant 2 : index
    %c0_33 = arith.constant 0 : index
    %c0_34 = arith.constant 0 : index
    %39 = vector.load %arg4[%c2_32, %c0_33, %c0_34] : memref<4x16x128xbf16, #tpu.memory_space<vmem>>, vector<1x16x128xbf16>
    %40 = vector.shape_cast %39 : vector<1x16x128xbf16> to vector<16x128xbf16>
    %cst_35 = arith.constant dense<0.000000e+00> : vector<8x128xf32>
    %41 = tpu.matmul %38, %40, %cst_35 {dimension_numbers = #tpu.dot_dimension_numbers<[1], [0], [0], [1], [0, 0, 1, 1], [], []>} : vector<8x16xbf16>, vector<16x128xbf16>, vector<8x128xf32> -> vector<8x128xf32>
    %42 = arith.addf %28, %41 : vector<8x128xf32>
    %c3 = arith.constant 3 : index
    %c0_36 = arith.constant 0 : index
    %c0_37 = arith.constant 0 : index
    %43 = vector.load %arg1[%c3, %c0_36, %c0_37] : memref<4x8x216xbf16, #tpu.memory_space<vmem>>, vector<1x8x216xbf16>
    %44 = vector.shape_cast %43 : vector<1x8x216xbf16> to vector<8x216xbf16>
    %c0_38 = arith.constant 0 : index
    %c0_39 = arith.constant 0 : index
    %45 = vector.load %arg2[%c0_38, %c0_39] : memref<216x16xbf16, #tpu.memory_space<vmem>>, vector<216x16xbf16>
    %cst_40 = arith.constant dense<0.000000e+00> : vector<8x16xf32>
    %46 = tpu.matmul %44, %45, %cst_40 {dimension_numbers = #tpu.dot_dimension_numbers<[1], [0], [0], [1], [0, 0, 1, 1], [], []>} : vector<8x216xbf16>, vector<216x16xbf16>, vector<8x16xf32> -> vector<8x16xf32>
    %c0_41 = arith.constant 0 : index
    %c0_42 = arith.constant 0 : index
    %47 = vector.load %arg3[%c0_41, %c0_42] : memref<1x16xf32, #tpu.memory_space<vmem>>, vector<1x16xf32>
    %48 = vector.broadcast %47 : vector<1x16xf32> to vector<8x16xf32>
    %49 = arith.addf %46, %48 : vector<8x16xf32>
    %cst_43 = arith.constant 0.000000e+00 : f32
    %50 = vector.broadcast %cst_43 : f32 to vector<8x16xf32>
    %51 = arith.maximumf %49, %50 : vector<8x16xf32>
    %52 = arith.truncf %51 : vector<8x16xf32> to vector<8x16xbf16>
    %c3_44 = arith.constant 3 : index
    %c0_45 = arith.constant 0 : index
    %c0_46 = arith.constant 0 : index
    %53 = vector.load %arg4[%c3_44, %c0_45, %c0_46] : memref<4x16x128xbf16, #tpu.memory_space<vmem>>, vector<1x16x128xbf16>
    %54 = vector.shape_cast %53 : vector<1x16x128xbf16> to vector<16x128xbf16>
    %cst_47 = arith.constant dense<0.000000e+00> : vector<8x128xf32>
    %55 = tpu.matmul %52, %54, %cst_47 {dimension_numbers = #tpu.dot_dimension_numbers<[1], [0], [0], [1], [0, 0, 1, 1], [], []>} : vector<8x16xbf16>, vector<16x128xbf16>, vector<8x128xf32> -> vector<8x128xf32>
    %56 = arith.addf %42, %55 : vector<8x128xf32>
    %c0_48 = arith.constant 0 : index
    %c0_49 = arith.constant 0 : index
    %57 = vector.load %arg5[%c0_48, %c0_49] : memref<1x128xf32, #tpu.memory_space<vmem>>, vector<1x128xf32>
    %58 = vector.broadcast %57 : vector<1x128xf32> to vector<8x128xf32>
    %59 = arith.addf %56, %58 : vector<8x128xf32>
    %cst_50 = arith.constant 0.000000e+00 : f32
    %60 = vector.broadcast %cst_50 : f32 to vector<8x128xf32>
    %61 = arith.maximumf %59, %60 : vector<8x128xf32>
    %62 = arith.truncf %61 : vector<8x128xf32> to vector<8x128xbf16>
    %c0_51 = arith.constant 0 : index
    %c0_52 = arith.constant 0 : index
    %63 = vector.load %arg6[%c0_51, %c0_52] : memref<128x128xbf16, #tpu.memory_space<vmem>>, vector<128x128xbf16>
    %cst_53 = arith.constant dense<0.000000e+00> : vector<8x128xf32>
    %64 = tpu.matmul %62, %63, %cst_53 {dimension_numbers = #tpu.dot_dimension_numbers<[1], [0], [0], [1], [0, 0, 1, 1], [], []>} : vector<8x128xbf16>, vector<128x128xbf16>, vector<8x128xf32> -> vector<8x128xf32>
    %c0_54 = arith.constant 0 : index
    %c0_55 = arith.constant 0 : index
    %65 = vector.load %arg7[%c0_54, %c0_55] : memref<1x128xf32, #tpu.memory_space<vmem>>, vector<1x128xf32>
    %66 = vector.broadcast %65 : vector<1x128xf32> to vector<8x128xf32>
    %67 = arith.addf %64, %66 : vector<8x128xf32>
    %cst_56 = arith.constant 0.000000e+00 : f32
    %68 = vector.broadcast %cst_56 : f32 to vector<8x128xf32>
    %69 = arith.maximumf %67, %68 : vector<8x128xf32>
    %70 = arith.truncf %69 : vector<8x128xf32> to vector<8x128xbf16>
    %c0_57 = arith.constant 0 : index
    %c0_58 = arith.constant 0 : index
    %71 = vector.load %arg8[%c0_57, %c0_58] : memref<128x128xbf16, #tpu.memory_space<vmem>>, vector<128x128xbf16>
    %cst_59 = arith.constant dense<0.000000e+00> : vector<8x128xf32>
    %72 = tpu.matmul %70, %71, %cst_59 {dimension_numbers = #tpu.dot_dimension_numbers<[1], [0], [0], [1], [0, 0, 1, 1], [], []>} : vector<8x128xbf16>, vector<128x128xbf16>, vector<8x128xf32> -> vector<8x128xf32>
    %c0_60 = arith.constant 0 : index
    %c0_61 = arith.constant 0 : index
    %73 = vector.load %arg9[%c0_60, %c0_61] : memref<1x128xf32, #tpu.memory_space<vmem>>, vector<1x128xf32>
    %74 = vector.broadcast %73 : vector<1x128xf32> to vector<8x128xf32>
    %75 = arith.addf %72, %74 : vector<8x128xf32>
    %c0_62 = arith.constant 0 : index
    %c0_63 = arith.constant 0 : index
    %76 = vector.load %arg10[%c0_62, %c0_63] : memref<8x128xf32, #tpu.memory_space<vmem>>, vector<8x128xf32>
    tpu.vector_store %arg10[%c0_62, %c0_63], %75 {strides = array<i32>} : memref<8x128xf32, #tpu.memory_space<vmem>>, vector<8x128xf32>,
    return
  }
  func.func @transform_0(%arg0: i32) -> (i32, i32, i32) {
    %c0_i32 = arith.constant 0 : i32
    %c0_i32_0 = arith.constant 0 : i32
    %c0_i32_1 = arith.constant 0 : i32
    %c0_i32_2 = arith.constant 0 : i32
    return %c0_i32, %c0_i32_0, %c0_i32_1 : i32, i32, i32
  }
  func.func @transform_1(%arg0: i32) -> (i32, i32) {
    %c0_i32 = arith.constant 0 : i32
    %c0_i32_0 = arith.constant 0 : i32
    %c0_i32_1 = arith.constant 0 : i32
    return %c0_i32, %c0_i32_0 : i32, i32
  }
  func.func @transform_2(%arg0: i32) -> (i32, i32) {
    %c0_i32 = arith.constant 0 : i32
    %c0_i32_0 = arith.constant 0 : i32
    %c0_i32_1 = arith.constant 0 : i32
    return %c0_i32, %c0_i32_0 : i32, i32
  }
  func.func @transform_3(%arg0: i32) -> (i32, i32, i32) {
    %c0_i32 = arith.constant 0 : i32
    %c0_i32_0 = arith.constant 0 : i32
    %c0_i32_1 = arith.constant 0 : i32
    %c0_i32_2 = arith.constant 0 : i32
    return %c0_i32, %c0_i32_0, %c0_i32_1 : i32, i32, i32
  }
  func.func @transform_4(%arg0: i32) -> (i32, i32) {
    %c0_i32 = arith.constant 0 : i32
    %c0_i32_0 = arith.constant 0 : i32
    %c0_i32_1 = arith.constant 0 : i32
    return %c0_i32, %c0_i32_0 : i32, i32
  }
  func.func @transform_5(%arg0: i32) -> (i32, i32) {
    %c0_i32 = arith.constant 0 : i32
    %c0_i32_0 = arith.constant 0 : i32
    %c0_i32_1 = arith.constant 0 : i32
    return %c0_i32, %c0_i32_0 : i32, i32
  }
  func.func @transform_6(%arg0: i32) -> (i32, i32) {
    %c0_i32 = arith.constant 0 : i32
    %c0_i32_0 = arith.constant 0 : i32
    %c0_i32_1 = arith.constant 0 : i32
    return %c0_i32, %c0_i32_0 : i32, i32
  }
  func.func @transform_7(%arg0: i32) -> (i32, i32) {
    %c0_i32 = arith.constant 0 : i32
    %c0_i32_0 = arith.constant 0 : i32
    %c0_i32_1 = arith.constant 0 : i32
    return %c0_i32, %c0_i32_0 : i32, i32
  }
  func.func @transform_8(%arg0: i32) -> (i32, i32) {
    %c0_i32 = arith.constant 0 : i32
    %c0_i32_0 = arith.constant 0 : i32
    %c0_i32_1 = arith.constant 0 : i32
    return %c0_i32, %c0_i32_0 : i32, i32
  }
  func.func @transform_9(%arg0: i32) -> (i32, i32) {
    %c0_i32 = arith.constant 0 : i32
    %c0_i32_0 = arith.constant 0 : i32
    %c0_i32_1 = arith.constant 0 : i32
    return %c0_i32, %c0_i32_0 : i32, i32
  }
}

</mosaic_0001>

<llo_original>
// kernel: _forward_impl.2
$region0: #{_forward_impl.2}
  #allocation0 [shape = 'u32[]', space=smem, size = 0x4, offset = 0x4, fixed_abs, tag = 'smem constant byte address 0x4 - core index']
  #allocation1 [shape = 'u32[144,128]{1,0:T(1,128)}', space=vmem, size = 0x12000, scoped, tag = 'internal scratch']
  %s0 = inlined_call_operand.vmem [shape: bf16[216,128], index: 0, kind: input, shape index: {}]
  %s1 = inlined_call_operand.vmem [shape: bf16[128,8], index: 1, kind: input, shape index: {}]
  %s2 = inlined_call_operand.vmem [shape: f32[1,8], index: 2, kind: input, shape index: {}]
  %s3 = inlined_call_operand.vmem [shape: bf16[216,8], index: 3, kind: output, shape index: {}]
  %s4 = sld [smem:[#allocation0]]
  $region22: #{_forward_impl.2} parent=0
    _
  %s6 = ssub.s32 1, %s4
  %s7 = scalar_select 0, %s6, %s4
  // Predicated region
  $region2: #{_forward_impl.2} parent=0 // pred_check
    _
  $region3: #{_forward_impl.2} parent=0 // pred_check_branch
    %9 = sbr.rel (0) target = $region5
  $region4: #{_forward_impl.2} parent=0 // pred_region
    _
  $region5: #{_forward_impl.2} parent=0 // pred_fallthru
    _
  // Predicated region
  $region6: #{_forward_impl.2} parent=0 // pred_check
    _
  $region7: #{_forward_impl.2} parent=0 // pred_check_branch
    %11 = sbr.rel (0) target = $region9
  $region8: #{_forward_impl.2} parent=0 // pred_region
    _
  $region9: #{_forward_impl.2} parent=0 // pred_fallthru
    _
  // Predicated region
  $region10: #{_forward_impl.2} parent=0 // pred_check
    _
  $region11: #{_forward_impl.2} parent=0 // pred_check_branch
    %13 = sbr.rel (0) target = $region13
  $region12: #{_forward_impl.2} parent=0 // pred_region
    _
  $region13: #{_forward_impl.2} parent=0 // pred_fallthru
    _
  %v15 = vld [vmem:[%s0] sm:$0xf]
  %v16 = vld [vmem:[%s0 + $0x4] sm:$0xf]
  %v17 = vld [vmem:[%s0 + $0x8] sm:$0xf]
  %v18 = vld [vmem:[%s0 + $0xc] sm:$0xf]
  %v19 = vld [vmem:[%s0 + $0x10] sm:$0xf]
  %v20 = vld [vmem:[%s0 + $0x14] sm:$0xf]
  %v21 = vld [vmem:[%s0 + $0x18] sm:$0xf]
  %v22 = vld [vmem:[%s0 + $0x1c] sm:$0xf]
  %v23 = vld [vmem:[%s0 + $0x20] sm:$0xf]
  %v24 = vld [vmem:[%s0 + $0x24] sm:$0xf]
  %v25 = vld [vmem:[%s0 + $0x28] sm:$0xf]
  %v26 = vld [vmem:[%s0 + $0x2c] sm:$0xf]
  %v27 = vld [vmem:[%s0 + $0x30] sm:$0xf]
  %v28 = vld [vmem:[%s0 + $0x34] sm:$0xf]
  %v29 = vld [vmem:[%s0 + $0x38] sm:$0xf]
  %v30 = vld [vmem:[%s0 + $0x3c] sm:$0xf]
  %v31 = vld [vmem:[%s0 + $0x40] sm:$0xf]
  %v32 = vld [vmem:[%s0 + $0x44] sm:$0xf]
  %v33 = vld [vmem:[%s0 + $0x48] sm:$0xf]
  %v34 = vld [vmem:[%s0 + $0x4c] sm:$0xf]
  %v35 = vld [vmem:[%s0 + $0x50] sm:$0xf]
  %v36 = vld [vmem:[%s0 + $0x54] sm:$0xf]
  %v37 = vld [vmem:[%s0 + $0x58] sm:$0xf]
  %v38 = vld [vmem:[%s0 + $0x5c] sm:$0xf]
  %v39 = vld [vmem:[%s0 + $0x60] sm:$0xf]
  %v40 = vld [vmem:[%s0 + $0x64] sm:$0xf]
  %v41 = vld [vmem:[%s0 + $0x68] sm:$0xf]
  %v42 = vld [vmem:[%s1] sm:$0xf]
  %v43 = vld [vmem:[%s1 + $0x4] sm:$0xf]
  %v44 = vld [vmem:[%s1 + $0x8] sm:$0xf]
  %v45 = vld [vmem:[%s1 + $0xc] sm:$0xf]
  %v46 = vld [vmem:[%s1 + $0x10] sm:$0xf]
  %v47 = vld [vmem:[%s1 + $0x14] sm:$0xf]
  %v48 = vld [vmem:[%s1 + $0x18] sm:$0xf]
  %v49 = vld [vmem:[%s1 + $0x1c] sm:$0xf]
  %v50 = vld [vmem:[%s1 + $0x20] sm:$0xf]
  %v51 = vld [vmem:[%s1 + $0x24] sm:$0xf]
  %v52 = vld [vmem:[%s1 + $0x28] sm:$0xf]
  %v53 = vld [vmem:[%s1 + $0x2c] sm:$0xf]
  %v54 = vld [vmem:[%s1 + $0x30] sm:$0xf]
  %v55 = vld [vmem:[%s1 + $0x34] sm:$0xf]
  %v56 = vld [vmem:[%s1 + $0x38] sm:$0xf]
  %v57 = vld [vmem:[%s1 + $0x3c] sm:$0xf]
  %v58 = vld [vmem:[%s2] sm:$0x1]
  %v60 = vlaneseq
  %v61 = vshrl.u32 %v60, 7
  %v62 = vsub.s32 0, %v61
  %v63 = vrot.slane %v58, %v62
  %v92 = vunpack.c.l.b16 %v15
  %v93 = vunpack.c.l.b16 %v16
  %v94 = vunpack.c.l.b16 %v17
  %v95 = vunpack.c.l.b16 %v18
  %v96 = vunpack.c.l.b16 %v19
  %v97 = vunpack.c.l.b16 %v20
  %v98 = vunpack.c.l.b16 %v21
  %v99 = vunpack.c.l.b16 %v22
  %v100 = vunpack.c.l.b16 %v23
  %v101 = vunpack.c.l.b16 %v24
  %v102 = vunpack.c.l.b16 %v25
  %v103 = vunpack.c.l.b16 %v26
  %v104 = vunpack.c.l.b16 %v27
  %v105 = vunpack.c.l.b16 %v28
  %v106 = vunpack.c.l.b16 %v29
  %v107 = vunpack.c.l.b16 %v30
  %v108 = vunpack.c.l.b16 %v31
  %v109 = vunpack.c.l.b16 %v32
  %v110 = vunpack.c.l.b16 %v33
  %v111 = vunpack.c.l.b16 %v34
  %v112 = vunpack.c.l.b16 %v35
  %v113 = vunpack.c.l.b16 %v36
  %v114 = vunpack.c.l.b16 %v37
  %v115 = vunpack.c.l.b16 %v38
  %v116 = vunpack.c.l.b16 %v39
  %v117 = vunpack.c.l.b16 %v40
  %v118 = vunpack.c.l.b16 %v41
  %v119 = vpack.c.b16 %v93, %v92
  %v120 = vpack.c.b16 %v95, %v94
  %v121 = vpack.c.b16 %v97, %v96
  %v122 = vpack.c.b16 %v99, %v98
  %v123 = vpack.c.b16 %v101, %v100
  %v124 = vpack.c.b16 %v103, %v102
  %v125 = vpack.c.b16 %v105, %v104
  %v126 = vpack.c.b16 %v107, %v106
  %v127 = vpack.c.b16 %v109, %v108
  %v128 = vpack.c.b16 %v111, %v110
  %v129 = vpack.c.b16 %v113, %v112
  %v130 = vpack.c.b16 %v115, %v114
  %v131 = vpack.c.b16 %v117, %v116
  %v132 = vpack.c.b16 %v118, %v118
  %v163 = vunpack.c.l.b16 %v42
  %v164 = vunpack.c.l.b16 %v43
  %v165 = vunpack.c.l.b16 %v44
  %v166 = vunpack.c.l.b16 %v45
  %v167 = vunpack.c.l.b16 %v46
  %v168 = vunpack.c.l.b16 %v47
  %v169 = vunpack.c.l.b16 %v48
  %v170 = vunpack.c.l.b16 %v49
  %v171 = vunpack.c.l.b16 %v50
  %v172 = vunpack.c.l.b16 %v51
  %v173 = vunpack.c.l.b16 %v52
  %v174 = vunpack.c.l.b16 %v53
  %v175 = vunpack.c.l.b16 %v54
  %v176 = vunpack.c.l.b16 %v55
  %v177 = vunpack.c.l.b16 %v56
  %v178 = vunpack.c.l.b16 %v57
  %v179 = vpack.c.b16 %v164, %v163
  %v180 = vpack.c.b16 %v166, %v165
  %v181 = vpack.c.b16 %v168, %v167
  %v182 = vpack.c.b16 %v170, %v169
  %v183 = vpack.c.b16 %v172, %v171
  %v184 = vpack.c.b16 %v174, %v173
  %v185 = vpack.c.b16 %v176, %v175
  %v186 = vpack.c.b16 %v178, %v177
  %195 = vmatprep.subr.bf16.mxu0 0
  %196 = vmatpush1.bf16.msra.mxu0 %v179
  %197 = vmatprep.subr.bf16.mxu0 0
  %198 = vmatpush1.bf16.msra.mxu0 %v180
  %199 = vmatprep.subr.bf16.mxu0 0
  %200 = vmatpush1.bf16.msra.mxu0 %v181
  %201 = vmatprep.subr.bf16.mxu0 0
  %202 = vmatpush1.bf16.msra.mxu0 %v182
  %203 = vmatprep.subr.bf16.mxu0 0
  %204 = vmatpush1.bf16.msra.mxu0 %v183
  %205 = vmatprep.subr.bf16.mxu0 0
  %206 = vmatpush1.bf16.msra.mxu0 %v184
  %207 = vmatprep.subr.bf16.mxu0 0
  %208 = vmatpush1.bf16.msra.mxu0 %v185
  %209 = vmatprep.subr.bf16.mxu0 0
  %210 = vmatpush1.bf16.msra.mxu0 %v186
  %211 = vmatprep.subr.bf16.mxu0 0
  %212 = vmatpush1.bf16.msra.mxu0 0
  %213 = vmatprep.subr.bf16.mxu0 0
  %214 = vmatpush1.bf16.msra.mxu0 0
  %215 = vmatprep.subr.bf16.mxu0 0
  %216 = vmatpush1.bf16.msra.mxu0 0
  %217 = vmatprep.subr.bf16.mxu0 0
  %218 = vmatpush1.bf16.msra.mxu0 0
  %219 = vmatprep.subr.bf16.mxu0 0
  %220 = vmatpush1.bf16.msra.mxu0 0
  %221 = vmatprep.subr.bf16.mxu0 0
  %222 = vmatpush1.bf16.msra.mxu0 0
  %223 = vmatprep.subr.bf16.mxu0 0
  %224 = vmatpush1.bf16.msra.mxu0 0
  %225 = vmatprep.subr.bf16.mxu0 0
  %226 = vmatpush1.bf16.msra.mxu0 0
  %227 = vmatprep.mubr.bf16.mxu0 0
  %228 = vmatmul.mubr.bf16.gmra.mrb[0].mxu0 %v119
  %v229 = vpop.f32.mrb[0].mxu0
  %v230 = vadd.f32 %v63, %v229
  %v231 = vpop.f32.mrb[0].mxu0
  %v232 = vpop.f32.mrb[0].mxu0
  %v233 = vadd.f32 %v63, %v232
  %v234 = vpop.f32.mrb[0].mxu0
  %235 = vmatprep.mubr.bf16.mxu0 0
  %236 = vmatmul.mubr.bf16.gmra.mrb[0].mxu0 %v120
  %v237 = vpop.f32.mrb[0].mxu0
  %v238 = vadd.f32 %v63, %v237
  %v239 = vpop.f32.mrb[0].mxu0
  %v240 = vpop.f32.mrb[0].mxu0
  %v241 = vadd.f32 %v63, %v240
  %v242 = vpop.f32.mrb[0].mxu0
  %243 = vmatprep.mubr.bf16.mxu0 0
  %244 = vmatmul.mubr.bf16.gmra.mrb[0].mxu0 %v121
  %v245 = vpop.f32.mrb[0].mxu0
  %v246 = vadd.f32 %v63, %v245
  %v247 = vpop.f32.mrb[0].mxu0
  %v248 = vpop.f32.mrb[0].mxu0
  %v249 = vadd.f32 %v63, %v248
  %v250 = vpop.f32.mrb[0].mxu0
  %251 = vmatprep.mubr.bf16.mxu0 0
  %252 = vmatmul.mubr.bf16.gmra.mrb[0].mxu0 %v122
  %v253 = vpop.f32.mrb[0].mxu0
  %v254 = vadd.f32 %v63, %v253
  %v255 = vpop.f32.mrb[0].mxu0
  %v256 = vpop.f32.mrb[0].mxu0
  %v257 = vadd.f32 %v63, %v256
  %v258 = vpop.f32.mrb[0].mxu0
  %259 = vmatprep.mubr.bf16.mxu0 0
  %260 = vmatmul.mubr.bf16.gmra.mrb[0].mxu0 %v123
  %v261 = vpop.f32.mrb[0].mxu0
  %v262 = vadd.f32 %v63, %v261
  %v263 = vpop.f32.mrb[0].mxu0
  %v264 = vpop.f32.mrb[0].mxu0
  %v265 = vadd.f32 %v63, %v264
  %v266 = vpop.f32.mrb[0].mxu0
  %267 = vmatprep.mubr.bf16.mxu0 0
  %268 = vmatmul.mubr.bf16.gmra.mrb[0].mxu0 %v124
  %v269 = vpop.f32.mrb[0].mxu0
  %v270 = vadd.f32 %v63, %v269
  %v271 = vpop.f32.mrb[0].mxu0
  %v272 = vpop.f32.mrb[0].mxu0
  %v273 = vadd.f32 %v63, %v272
  %v274 = vpop.f32.mrb[0].mxu0
  %275 = vmatprep.mubr.bf16.mxu0 0
  %276 = vmatmul.mubr.bf16.gmra.mrb[0].mxu0 %v125
  %v277 = vpop.f32.mrb[0].mxu0
  %v278 = vadd.f32 %v63, %v277
  %v279 = vpop.f32.mrb[0].mxu0
  %v280 = vpop.f32.mrb[0].mxu0
  %v281 = vadd.f32 %v63, %v280
  %v282 = vpop.f32.mrb[0].mxu0
  %283 = vmatprep.mubr.bf16.mxu0 0
  %284 = vmatmul.mubr.bf16.gmra.mrb[0].mxu0 %v126
  %v285 = vpop.f32.mrb[0].mxu0
  %v286 = vadd.f32 %v63, %v285
  %v287 = vpop.f32.mrb[0].mxu0
  %v288 = vpop.f32.mrb[0].mxu0
  %v289 = vadd.f32 %v63, %v288
  %v290 = vpop.f32.mrb[0].mxu0
  %291 = vmatprep.mubr.bf16.mxu0 0
  %292 = vmatmul.mubr.bf16.gmra.mrb[0].mxu0 %v127
  %v293 = vpop.f32.mrb[0].mxu0
  %v294 = vadd.f32 %v63, %v293
  %v295 = vpop.f32.mrb[0].mxu0
  %v296 = vpop.f32.mrb[0].mxu0
  %v297 = vadd.f32 %v63, %v296
  %v298 = vpop.f32.mrb[0].mxu0
  %299 = vmatprep.mubr.bf16.mxu0 0
  %300 = vmatmul.mubr.bf16.gmra.mrb[0].mxu0 %v128
  %v301 = vpop.f32.mrb[0].mxu0
  %v302 = vadd.f32 %v63, %v301
  %v303 = vpop.f32.mrb[0].mxu0
  %v304 = vpop.f32.mrb[0].mxu0
  %v305 = vadd.f32 %v63, %v304
  %v306 = vpop.f32.mrb[0].mxu0
  %307 = vmatprep.mubr.bf16.mxu0 0
  %308 = vmatmul.mubr.bf16.gmra.mrb[0].mxu0 %v129
  %v309 = vpop.f32.mrb[0].mxu0
  %v310 = vadd.f32 %v63, %v309
  %v311 = vpop.f32.mrb[0].mxu0
  %v312 = vpop.f32.mrb[0].mxu0
  %v313 = vadd.f32 %v63, %v312
  %v314 = vpop.f32.mrb[0].mxu0
  %315 = vmatprep.mubr.bf16.mxu0 0
  %316 = vmatmul.mubr.bf16.gmra.mrb[0].mxu0 %v130
  %v317 = vpop.f32.mrb[0].mxu0
  %v318 = vadd.f32 %v63, %v317
  %v319 = vpop.f32.mrb[0].mxu0
  %v320 = vpop.f32.mrb[0].mxu0
  %v321 = vadd.f32 %v63, %v320
  %v322 = vpop.f32.mrb[0].mxu0
  %323 = vmatprep.mubr.bf16.mxu0 0
  %324 = vmatmul.mubr.bf16.gmra.mrb[0].mxu0 %v131
  %v325 = vpop.f32.mrb[0].mxu0
  %v326 = vadd.f32 %v63, %v325
  %v327 = vpop.f32.mrb[0].mxu0
  %v328 = vpop.f32.mrb[0].mxu0
  %v329 = vadd.f32 %v63, %v328
  %v330 = vpop.f32.mrb[0].mxu0
  %331 = vmatprep.mubr.bf16.mxu0 0
  %332 = vmatmul.mubr.bf16.gmra.mrb[0].mxu0 %v132
  %v333 = vpop.f32.mrb[0].mxu0
  %v334 = vadd.f32 %v63, %v333
  %v335 = vpop.f32.mrb[0].mxu0
  %v336 = vpop.f32.mrb[0].mxu0
  %v337 = vpop.f32.mrb[0].mxu0
  %338 = vdwg.mxu0
  %v339 = vmax.f32 %v230, 0.0
  %v340 = vmax.f32 %v233, 0.0
  %v341 = vmax.f32 %v238, 0.0
  %v342 = vmax.f32 %v241, 0.0
  %v343 = vmax.f32 %v246, 0.0
  %v344 = vmax.f32 %v249, 0.0
  %v345 = vmax.f32 %v254, 0.0
  %v346 = vmax.f32 %v257, 0.0
  %v347 = vmax.f32 %v262, 0.0
  %v348 = vmax.f32 %v265, 0.0
  %v349 = vmax.f32 %v270, 0.0
  %v350 = vmax.f32 %v273, 0.0
  %v351 = vmax.f32 %v278, 0.0
  %v352 = vmax.f32 %v281, 0.0
  %v353 = vmax.f32 %v286, 0.0
  %v354 = vmax.f32 %v289, 0.0
  %v355 = vmax.f32 %v294, 0.0
  %v356 = vmax.f32 %v297, 0.0
  %v357 = vmax.f32 %v302, 0.0
  %v358 = vmax.f32 %v305, 0.0
  %v359 = vmax.f32 %v310, 0.0
  %v360 = vmax.f32 %v313, 0.0
  %v361 = vmax.f32 %v318, 0.0
  %v362 = vmax.f32 %v321, 0.0
  %v363 = vmax.f32 %v326, 0.0
  %v364 = vmax.f32 %v329, 0.0
  %v365 = vmax.f32 %v334, 0.0
  %v366 = vpack.c.bf16 %v340, %v339
  %v367 = vpack.c.bf16 %v342, %v341
  %v368 = vpack.c.bf16 %v344, %v343
  %v369 = vpack.c.bf16 %v346, %v345
  %v370 = vpack.c.bf16 %v348, %v347
  %v371 = vpack.c.bf16 %v350, %v349
  %v372 = vpack.c.bf16 %v352, %v351
  %v373 = vpack.c.bf16 %v354, %v353
  %v374 = vpack.c.bf16 %v356, %v355
  %v375 = vpack.c.bf16 %v358, %v357
  %v376 = vpack.c.bf16 %v360, %v359
  %v377 = vpack.c.bf16 %v362, %v361
  %v378 = vpack.c.bf16 %v364, %v363
  %v379 = vpack.c.bf16 %v365, %v365
  %v394 = vunpack.c.l.b16 %v366
  %v395 = vunpack.c.h.b16 %v366
  %v396 = vunpack.c.l.b16 %v367
  %v397 = vunpack.c.h.b16 %v367
  %v398 = vunpack.c.l.b16 %v368
  %v399 = vunpack.c.h.b16 %v368
  %v400 = vunpack.c.l.b16 %v369
  %v401 = vunpack.c.h.b16 %v369
  %v402 = vunpack.c.l.b16 %v370
  %v403 = vunpack.c.h.b16 %v370
  %v404 = vunpack.c.l.b16 %v371
  %v405 = vunpack.c.h.b16 %v371
  %v406 = vunpack.c.l.b16 %v372
  %v407 = vunpack.c.h.b16 %v372
  %v408 = vunpack.c.l.b16 %v373
  %v409 = vunpack.c.h.b16 %v373
  %v410 = vunpack.c.l.b16 %v374
  %v411 = vunpack.c.h.b16 %v374
  %v412 = vunpack.c.l.b16 %v375
  %v413 = vunpack.c.h.b16 %v375
  %v414 = vunpack.c.l.b16 %v376
  %v415 = vunpack.c.h.b16 %v376
  %v416 = vunpack.c.l.b16 %v377
  %v417 = vunpack.c.h.b16 %v377
  %v418 = vunpack.c.l.b16 %v378
  %v419 = vunpack.c.h.b16 %v378
  %v420 = vunpack.c.l.b16 %v379
  %v421 = vpack.c.b16 %v394, %v394
  %v422 = vpack.c.b16 %v395, %v395
  %v423 = vpack.c.b16 %v396, %v396
  %v424 = vpack.c.b16 %v397, %v397
  %v425 = vpack.c.b16 %v398, %v398
  %v426 = vpack.c.b16 %v399, %v399
  %v427 = vpack.c.b16 %v400, %v400
  %v428 = vpack.c.b16 %v401, %v401
  %v429 = vpack.c.b16 %v402, %v402
  %v430 = vpack.c.b16 %v403, %v403
  %v431 = vpack.c.b16 %v404, %v404
  %v432 = vpack.c.b16 %v405, %v405
  %v433 = vpack.c.b16 %v406, %v406
  %v434 = vpack.c.b16 %v407, %v407
  %v435 = vpack.c.b16 %v408, %v408
  %v436 = vpack.c.b16 %v409, %v409
  %v437 = vpack.c.b16 %v410, %v410
  %v438 = vpack.c.b16 %v411, %v411
  %v439 = vpack.c.b16 %v412, %v412
  %v440 = vpack.c.b16 %v413, %v413
  %v441 = vpack.c.b16 %v414, %v414
  %v442 = vpack.c.b16 %v415, %v415
  %v443 = vpack.c.b16 %v416, %v416
  %v444 = vpack.c.b16 %v417, %v417
  %v445 = vpack.c.b16 %v418, %v418
  %v446 = vpack.c.b16 %v419, %v419
  %v447 = vpack.c.b16 %v420, %v420
  %vm475 = vcmask 60416
  %476 = vst.msk [vmem:[%s3] sm:$0xf] %vm475, %v421
  %477 = vst.msk [vmem:[%s3 + $0x4] sm:$0xf] %vm475, %v422
  %478 = vst.msk [vmem:[%s3 + $0x8] sm:$0xf] %vm475, %v423
  %479 = vst.msk [vmem:[%s3 + $0xc] sm:$0xf] %vm475, %v424
  %480 = vst.msk [vmem:[%s3 + $0x10] sm:$0xf] %vm475, %v425
  %481 = vst.msk [vmem:[%s3 + $0x14] sm:$0xf] %vm475, %v426
  %482 = vst.msk [vmem:[%s3 + $0x18] sm:$0xf] %vm475, %v427
  %483 = vst.msk [vmem:[%s3 + $0x1c] sm:$0xf] %vm475, %v428
  %484 = vst.msk [vmem:[%s3 + $0x20] sm:$0xf] %vm475, %v429
  %485 = vst.msk [vmem:[%s3 + $0x24] sm:$0xf] %vm475, %v430
  %486 = vst.msk [vmem:[%s3 + $0x28] sm:$0xf] %vm475, %v431
  %487 = vst.msk [vmem:[%s3 + $0x2c] sm:$0xf] %vm475, %v432
  %488 = vst.msk [vmem:[%s3 + $0x30] sm:$0xf] %vm475, %v433
  %489 = vst.msk [vmem:[%s3 + $0x34] sm:$0xf] %vm475, %v434
  %490 = vst.msk [vmem:[%s3 + $0x38] sm:$0xf] %vm475, %v435
  %491 = vst.msk [vmem:[%s3 + $0x3c] sm:$0xf] %vm475, %v436
  %492 = vst.msk [vmem:[%s3 + $0x40] sm:$0xf] %vm475, %v437
  %493 = vst.msk [vmem:[%s3 + $0x44] sm:$0xf] %vm475, %v438
  %494 = vst.msk [vmem:[%s3 + $0x48] sm:$0xf] %vm475, %v439
  %495 = vst.msk [vmem:[%s3 + $0x4c] sm:$0xf] %vm475, %v440
  %496 = vst.msk [vmem:[%s3 + $0x50] sm:$0xf] %vm475, %v441
  %497 = vst.msk [vmem:[%s3 + $0x54] sm:$0xf] %vm475, %v442
  %498 = vst.msk [vmem:[%s3 + $0x58] sm:$0xf] %vm475, %v443
  %499 = vst.msk [vmem:[%s3 + $0x5c] sm:$0xf] %vm475, %v444
  %500 = vst.msk [vmem:[%s3 + $0x60] sm:$0xf] %vm475, %v445
  %501 = vst.msk [vmem:[%s3 + $0x64] sm:$0xf] %vm475, %v446
  %502 = vst.msk [vmem:[%s3 + $0x68] sm:$0xf] %vm475, %v447
  // Predicated region
  $region14: #{_forward_impl.2} parent=0 // pred_check
    _
  $region15: #{_forward_impl.2} parent=0 // pred_check_branch
    %504 = sbr.rel (0) target = $region17
  $region16: #{_forward_impl.2} parent=0 // pred_region
    _
  $region17: #{_forward_impl.2} parent=0 // pred_fallthru
    _
  // Predicated region
  $region18: #{_forward_impl.2} parent=0 // pred_check
    _
  $region19: #{_forward_impl.2} parent=0 // pred_check_branch
    %506 = sbr.rel (0) target = $region21
  $region20: #{_forward_impl.2} parent=0 // pred_region
    _
  $region21: #{_forward_impl.2} parent=0 // pred_fallthru
    _

// kernel: _forward_impl.3
$region0: #{_forward_impl.3}
  #allocation0 [shape = 'u32[]', space=smem, size = 0x4, offset = 0x4, fixed_abs, tag = 'smem constant byte address 0x4 - core index']
  #allocation1 [shape = 'u32[144,128]{1,0:T(1,128)}', space=vmem, size = 0x12000, scoped, tag = 'internal scratch']
  %s0 = inlined_call_operand.vmem [shape: bf16[4,8,216], index: 0, kind: input, shape index: {}]
  %s1 = inlined_call_operand.vmem [shape: bf16[216,16], index: 1, kind: input, shape index: {}]
  %s2 = inlined_call_operand.vmem [shape: f32[1,16], index: 2, kind: input, shape index: {}]
  %s3 = inlined_call_operand.vmem [shape: bf16[4,16,128], index: 3, kind: input, shape index: {}]
  %s4 = inlined_call_operand.vmem [shape: f32[1,128], index: 4, kind: input, shape index: {}]
  %s5 = inlined_call_operand.vmem [shape: bf16[128,128], index: 5, kind: input, shape index: {}]
  %s6 = inlined_call_operand.vmem [shape: f32[1,128], index: 6, kind: input, shape index: {}]
  %s7 = inlined_call_operand.vmem [shape: bf16[128,128], index: 7, kind: input, shape index: {}]
  %s8 = inlined_call_operand.vmem [shape: f32[1,128], index: 8, kind: input, shape index: {}]
  %s9 = inlined_call_operand.vmem [shape: f32[8,128], index: 9, kind: output, shape index: {}]
  %s10 = sld [smem:[#allocation0]]
  $region46: #{_forward_impl.3} parent=0
    _
  %s12 = ssub.s32 1, %s10
  %s13 = scalar_select 0, %s12, %s10
  // Predicated region
  $region2: #{_forward_impl.3} parent=0 // pred_check
    _
  $region3: #{_forward_impl.3} parent=0 // pred_check_branch
    %15 = sbr.rel (0) target = $region5
  $region4: #{_forward_impl.3} parent=0 // pred_region
    _
  $region5: #{_forward_impl.3} parent=0 // pred_fallthru
    _
  // Predicated region
  $region6: #{_forward_impl.3} parent=0 // pred_check
    _
  $region7: #{_forward_impl.3} parent=0 // pred_check_branch
    %17 = sbr.rel (0) target = $region9
  $region8: #{_forward_impl.3} parent=0 // pred_region
    _
  $region9: #{_forward_impl.3} parent=0 // pred_fallthru
    _
  // Predicated region
  $region10: #{_forward_impl.3} parent=0 // pred_check
    _
  $region11: #{_forward_impl.3} parent=0 // pred_check_branch
    %19 = sbr.rel (0) target = $region13
  $region12: #{_forward_impl.3} parent=0 // pred_region
    _
  $region13: #{_forward_impl.3} parent=0 // pred_fallthru
    _
  // Predicated region
  $region14: #{_forward_impl.3} parent=0 // pred_check
    _
  $region15: #{_forward_impl.3} parent=0 // pred_check_branch
    %21 = sbr.rel (0) target = $region17
  $region16: #{_forward_impl.3} parent=0 // pred_region
    _
  $region17: #{_forward_impl.3} parent=0 // pred_fallthru
    _
  // Predicated region
  $region18: #{_forward_impl.3} parent=0 // pred_check
    _
  $region19: #{_forward_impl.3} parent=0 // pred_check_branch
    %23 = sbr.rel (0) target = $region21
  $region20: #{_forward_impl.3} parent=0 // pred_region
    _
  $region21: #{_forward_impl.3} parent=0 // pred_fallthru
    _
  // Predicated region
  $region22: #{_forward_impl.3} parent=0 // pred_check
    _
  $region23: #{_forward_impl.3} parent=0 // pred_check_branch
    %25 = sbr.rel (0) target = $region25
  $region24: #{_forward_impl.3} parent=0 // pred_region
    _
  $region25: #{_forward_impl.3} parent=0 // pred_fallthru
    _
  // Predicated region
  $region26: #{_forward_impl.3} parent=0 // pred_check
    _
  $region27: #{_forward_impl.3} parent=0 // pred_check_branch
    %27 = sbr.rel (0) target = $region29
  $region28: #{_forward_impl.3} parent=0 // pred_region
    _
  $region29: #{_forward_impl.3} parent=0 // pred_fallthru
    _
  // Predicated region
  $region30: #{_forward_impl.3} parent=0 // pred_check
    _
  $region31: #{_forward_impl.3} parent=0 // pred_check_branch
    %29 = sbr.rel (0) target = $region33
  $region32: #{_forward_impl.3} parent=0 // pred_region
    _
  $region33: #{_forward_impl.3} parent=0 // pred_fallthru
    _
  // Predicated region
  $region34: #{_forward_impl.3} parent=0 // pred_check
    _
  $region35: #{_forward_impl.3} parent=0 // pred_check_branch
    %31 = sbr.rel (0) target = $region37
  $region36: #{_forward_impl.3} parent=0 // pred_region
    _
  $region37: #{_forward_impl.3} parent=0 // pred_fallthru
    _
  %v33 = vld [vmem:[%s0] sm:$0xff]
  %v34 = vld [vmem:[%s1] sm:$0xf]
  %v35 = vld [vmem:[%s1 + $0x4] sm:$0xf]
  %v36 = vld [vmem:[%s1 + $0x8] sm:$0xf]
  %v37 = vld [vmem:[%s1 + $0xc] sm:$0xf]
  %v38 = vld [vmem:[%s1 + $0x10] sm:$0xf]
  %v39 = vld [vmem:[%s1 + $0x14] sm:$0xf]
  %v40 = vld [vmem:[%s1 + $0x18] sm:$0xf]
  %v41 = vld [vmem:[%s1 + $0x1c] sm:$0xf]
  %v42 = vld [vmem:[%s1 + $0x20] sm:$0xf]
  %v43 = vld [vmem:[%s1 + $0x24] sm:$0xf]
  %v44 = vld [vmem:[%s1 + $0x28] sm:$0xf]
  %v45 = vld [vmem:[%s1 + $0x2c] sm:$0xf]
  %v46 = vld [vmem:[%s1 + $0x30] sm:$0xf]
  %v47 = vld [vmem:[%s1 + $0x34] sm:$0xf]
  %v48 = vld [vmem:[%s1 + $0x38] sm:$0xf]
  %v49 = vld [vmem:[%s1 + $0x3c] sm:$0xf]
  %v50 = vld [vmem:[%s1 + $0x40] sm:$0xf]
  %v51 = vld [vmem:[%s1 + $0x44] sm:$0xf]
  %v52 = vld [vmem:[%s1 + $0x48] sm:$0xf]
  %v53 = vld [vmem:[%s1 + $0x4c] sm:$0xf]
  %v54 = vld [vmem:[%s1 + $0x50] sm:$0xf]
  %v55 = vld [vmem:[%s1 + $0x54] sm:$0xf]
  %v56 = vld [vmem:[%s1 + $0x58] sm:$0xf]
  %v57 = vld [vmem:[%s1 + $0x5c] sm:$0xf]
  %v58 = vld [vmem:[%s1 + $0x60] sm:$0xf]
  %v59 = vld [vmem:[%s1 + $0x64] sm:$0xf]
  %v60 = vld [vmem:[%s1 + $0x68] sm:$0xf]
  %v61 = vld [vmem:[%s2] sm:$0x1]
  %v63 = vlaneseq
  %v64 = vshrl.u32 %v63, 7
  %v65 = vsub.s32 0, %v64
  %v66 = vrot.slane %v61, %v65
  %v69 = vunpack.c.l.b16 %v33
  %v70 = vunpack.c.h.b16 %v33
  %v71 = vpack.c.b16 %v69, %v69
  %v72 = vpack.c.b16 %v70, %v70
  %v101 = vunpack.c.l.b16 %v34
  %v102 = vunpack.c.l.b16 %v35
  %v103 = vunpack.c.l.b16 %v36
  %v104 = vunpack.c.l.b16 %v37
  %v105 = vunpack.c.l.b16 %v38
  %v106 = vunpack.c.l.b16 %v39
  %v107 = vunpack.c.l.b16 %v40
  %v108 = vunpack.c.l.b16 %v41
  %v109 = vunpack.c.l.b16 %v42
  %v110 = vunpack.c.l.b16 %v43
  %v111 = vunpack.c.l.b16 %v44
  %v112 = vunpack.c.l.b16 %v45
  %v113 = vunpack.c.l.b16 %v46
  %v114 = vunpack.c.l.b16 %v47
  %v115 = vunpack.c.l.b16 %v48
  %v116 = vunpack.c.l.b16 %v49
  %v117 = vunpack.c.l.b16 %v50
  %v118 = vunpack.c.l.b16 %v51
  %v119 = vunpack.c.l.b16 %v52
  %v120 = vunpack.c.l.b16 %v53
  %v121 = vunpack.c.l.b16 %v54
  %v122 = vunpack.c.l.b16 %v55
  %v123 = vunpack.c.l.b16 %v56
  %v124 = vunpack.c.l.b16 %v57
  %v125 = vunpack.c.l.b16 %v58
  %v126 = vunpack.c.l.b16 %v59
  %v127 = vunpack.c.l.b16 %v60
  %v128 = vpack.c.b16 %v102, %v101
  %v129 = vpack.c.b16 %v104, %v103
  %v130 = vpack.c.b16 %v106, %v105
  %v131 = vpack.c.b16 %v108, %v107
  %v132 = vpack.c.b16 %v110, %v109
  %v133 = vpack.c.b16 %v112, %v111
  %v134 = vpack.c.b16 %v114, %v113
  %v135 = vpack.c.b16 %v116, %v115
  %v136 = vpack.c.b16 %v118, %v117
  %v137 = vpack.c.b16 %v120, %v119
  %v138 = vpack.c.b16 %v122, %v121
  %v139 = vpack.c.b16 %v124, %v123
  %v140 = vpack.c.b16 %v126, %v125
  %v141 = vpack.c.b16 %v127, %v127
  %vm155 = vcmask 719872
  %v157 = vsel %vm155, %v72, 0
  %vm159 = vcmask 1043456
  %v161 = vsel %vm159, %v141, 0
  %163 = vmatprep.subr.bf16.mxu0 0
  %164 = vmatpush1.bf16.msra.mxu0 %v128
  %165 = vmatprep.subr.bf16.mxu0 0
  %166 = vmatpush1.bf16.msra.mxu0 %v129
  %167 = vmatprep.subr.bf16.mxu0 0
  %168 = vmatpush1.bf16.msra.mxu0 %v130
  %169 = vmatprep.subr.bf16.mxu0 0
  %170 = vmatpush1.bf16.msra.mxu0 %v131
  %171 = vmatprep.subr.bf16.mxu0 0
  %172 = vmatpush1.bf16.msra.mxu0 %v132
  %173 = vmatprep.subr.bf16.mxu0 0
  %174 = vmatpush1.bf16.msra.mxu0 %v133
  %175 = vmatprep.subr.bf16.mxu0 0
  %176 = vmatpush1.bf16.msra.mxu0 %v134
  %177 = vmatprep.subr.bf16.mxu0 0
  %178 = vmatpush1.bf16.msra.mxu0 %v135
  %179 = vmatprep.subr.bf16.mxu0 0
  %180 = vmatpush1.bf16.msra.mxu0 %v136
  %181 = vmatprep.subr.bf16.mxu0 0
  %182 = vmatpush1.bf16.msra.mxu0 %v137
  %183 = vmatprep.subr.bf16.mxu0 0
  %184 = vmatpush1.bf16.msra.mxu0 %v138
  %185 = vmatprep.subr.bf16.mxu0 0
  %186 = vmatpush1.bf16.msra.mxu0 %v139
  %187 = vmatprep.subr.bf16.mxu0 0
  %188 = vmatpush1.bf16.msra.mxu0 %v140
  %189 = vmatprep.subr.bf16.mxu0 0
  %190 = vmatpush1.bf16.msra.mxu0 %v161
  %191 = vmatprep.subr.bf16.mxu0 0
  %192 = vmatpush1.bf16.msra.mxu0 0
  %193 = vmatprep.subr.bf16.mxu0 0
  %194 = vmatpush1.bf16.msra.mxu0 0
  %195 = vmatprep.mubr.bf16.mxu0 %v157
  %196 = vmatmul.mubr.bf16.gmra.mrb[0].mxu0 %v71
  %v197 = vpop.f32.mrb[0].mxu0
  %v198 = vadd.f32 %v66, %v197
  %v199 = vpop.f32.mrb[0].mxu0
  %v200 = vpop.f32.mrb[0].mxu0
  %v201 = vpop.f32.mrb[0].mxu0
  %202 = vdwg.mxu0
  %v203 = vmax.f32 %v198, 0.0
  %v204 = vpack.c.bf16 %v203, %v203
  %v205 = vld [vmem:[%s3] sm:$0xf]
  %v206 = vld [vmem:[%s3 + $0x4] sm:$0xf]
  %s207 = scalar_lea.vmem %s0, 8
  %v208 = vld [vmem:[%s207] sm:$0xff]
  %v210 = vunpack.c.l.b16 %v208
  %v211 = vunpack.c.h.b16 %v208
  %v212 = vpack.c.b16 %v210, %v210
  %v213 = vpack.c.b16 %v211, %v211
  %v216 = vsel %vm155, %v213, 0
  %218 = vmatprep.subr.bf16.mxu0 0
  %219 = vmatpush1.bf16.msra.mxu0 %v128
  %220 = vmatprep.subr.bf16.mxu0 0
  %221 = vmatpush1.bf16.msra.mxu0 %v129
  %222 = vmatprep.subr.bf16.mxu0 0
  %223 = vmatpush1.bf16.msra.mxu0 %v130
  %224 = vmatprep.subr.bf16.mxu0 0
  %225 = vmatpush1.bf16.msra.mxu0 %v131
  %226 = vmatprep.subr.bf16.mxu0 0
  %227 = vmatpush1.bf16.msra.mxu0 %v132
  %228 = vmatprep.subr.bf16.mxu0 0
  %229 = vmatpush1.bf16.msra.mxu0 %v133
  %230 = vmatprep.subr.bf16.mxu0 0
  %231 = vmatpush1.bf16.msra.mxu0 %v134
  %232 = vmatprep.subr.bf16.mxu0 0
  %233 = vmatpush1.bf16.msra.mxu0 %v135
  %234 = vmatprep.subr.bf16.mxu0 0
  %235 = vmatpush1.bf16.msra.mxu0 %v136
  %236 = vmatprep.subr.bf16.mxu0 0
  %237 = vmatpush1.bf16.msra.mxu0 %v137
  %238 = vmatprep.subr.bf16.mxu0 0
  %239 = vmatpush1.bf16.msra.mxu0 %v138
  %240 = vmatprep.subr.bf16.mxu0 0
  %241 = vmatpush1.bf16.msra.mxu0 %v139
  %242 = vmatprep.subr.bf16.mxu0 0
  %243 = vmatpush1.bf16.msra.mxu0 %v140
  %244 = vmatprep.subr.bf16.mxu0 0
  %245 = vmatpush1.bf16.msra.mxu0 %v161
  %246 = vmatprep.subr.bf16.mxu0 0
  %247 = vmatpush1.bf16.msra.mxu0 0
  %248 = vmatprep.subr.bf16.mxu0 0
  %249 = vmatpush1.bf16.msra.mxu0 0
  %250 = vmatprep.mubr.bf16.mxu0 %v216
  %251 = vmatmul.mubr.bf16.gmra.mrb[0].mxu0 %v212
  %v252 = vpop.f32.mrb[0].mxu0
  %v253 = vadd.f32 %v66, %v252
  %v254 = vpop.f32.mrb[0].mxu0
  %v255 = vpop.f32.mrb[0].mxu0
  %v256 = vpop.f32.mrb[0].mxu0
  %257 = vdwg.mxu0
  %v258 = vmax.f32 %v253, 0.0
  %v259 = vpack.c.bf16 %v258, %v258
  %s260 = scalar_lea.vmem %s3, 8
  %v261 = vld [vmem:[%s260] sm:$0xf]
  %v262 = vld [vmem:[%s260 + $0x4] sm:$0xf]
  %v265 = vunpack.c.l.b16 %v261
  %v266 = vunpack.c.l.b16 %v262
  %v267 = vpack.c.b16 %v266, %v265
  %vm269 = vcmask 130048
  %v271 = vsel %vm269, %v259, 0
  %273 = vmatprep.subr.bf16.mxu0 0
  %274 = vmatpush1.bf16.msra.mxu0 %v267
  %275 = vmatprep.subr.bf16.mxu0 0
  %276 = vmatpush1.bf16.msra.mxu0 0
  %277 = vmatprep.subr.bf16.mxu0 0
  %278 = vmatpush1.bf16.msra.mxu0 0
  %279 = vmatprep.subr.bf16.mxu0 0
  %280 = vmatpush1.bf16.msra.mxu0 0
  %281 = vmatprep.subr.bf16.mxu0 0
  %282 = vmatpush1.bf16.msra.mxu0 0
  %283 = vmatprep.subr.bf16.mxu0 0
  %284 = vmatpush1.bf16.msra.mxu0 0
  %285 = vmatprep.subr.bf16.mxu0 0
  %286 = vmatpush1.bf16.msra.mxu0 0
  %287 = vmatprep.subr.bf16.mxu0 0
  %288 = vmatpush1.bf16.msra.mxu0 0
  %289 = vmatprep.subr.bf16.mxu0 0
  %290 = vmatpush1.bf16.msra.mxu0 0
  %291 = vmatprep.subr.bf16.mxu0 0
  %292 = vmatpush1.bf16.msra.mxu0 0
  %293 = vmatprep.subr.bf16.mxu0 0
  %294 = vmatpush1.bf16.msra.mxu0 0
  %295 = vmatprep.subr.bf16.mxu0 0
  %296 = vmatpush1.bf16.msra.mxu0 0
  %297 = vmatprep.subr.bf16.mxu0 0
  %298 = vmatpush1.bf16.msra.mxu0 0
  %299 = vmatprep.subr.bf16.mxu0 0
  %300 = vmatpush1.bf16.msra.mxu0 0
  %301 = vmatprep.subr.bf16.mxu0 0
  %302 = vmatpush1.bf16.msra.mxu0 0
  %303 = vmatprep.subr.bf16.mxu0 0
  %304 = vmatpush1.bf16.msra.mxu0 0
  %305 = vmatprep.mubr.bf16.mxu0 0
  %306 = vmatmul.mubr.bf16.gmra.mrb[0].mxu0 %v271
  %v307 = vpop.f32.mrb[0].mxu0
  %v308 = vadd.f32 0.0, %v307
  %v309 = vpop.f32.mrb[0].mxu0
  %v310 = vpop.f32.mrb[0].mxu0
  %v311 = vpop.f32.mrb[0].mxu0
  %312 = vdwg.mxu0
  %v315 = vunpack.c.l.b16 %v205
  %v316 = vunpack.c.l.b16 %v206
  %v317 = vpack.c.b16 %v316, %v315
  %v320 = vsel %vm269, %v204, 0
  %322 = vmatprep.subr.bf16.mxu0 0
  %323 = vmatpush1.bf16.msra.mxu0 %v317
  %324 = vmatprep.subr.bf16.mxu0 0
  %325 = vmatpush1.bf16.msra.mxu0 0
  %326 = vmatprep.subr.bf16.mxu0 0
  %327 = vmatpush1.bf16.msra.mxu0 0
  %328 = vmatprep.subr.bf16.mxu0 0
  %329 = vmatpush1.bf16.msra.mxu0 0
  %330 = vmatprep.subr.bf16.mxu0 0
  %331 = vmatpush1.bf16.msra.mxu0 0
  %332 = vmatprep.subr.bf16.mxu0 0
  %333 = vmatpush1.bf16.msra.mxu0 0
  %334 = vmatprep.subr.bf16.mxu0 0
  %335 = vmatpush1.bf16.msra.mxu0 0
  %336 = vmatprep.subr.bf16.mxu0 0
  %337 = vmatpush1.bf16.msra.mxu0 0
  %338 = vmatprep.subr.bf16.mxu0 0
  %339 = vmatpush1.bf16.msra.mxu0 0
  %340 = vmatprep.subr.bf16.mxu0 0
  %341 = vmatpush1.bf16.msra.mxu0 0
  %342 = vmatprep.subr.bf16.mxu0 0
  %343 = vmatpush1.bf16.msra.mxu0 0
  %344 = vmatprep.subr.bf16.mxu0 0
  %345 = vmatpush1.bf16.msra.mxu0 0
  %346 = vmatprep.subr.bf16.mxu0 0
  %347 = vmatpush1.bf16.msra.mxu0 0
  %348 = vmatprep.subr.bf16.mxu0 0
  %349 = vmatpush1.bf16.msra.mxu0 0
  %350 = vmatprep.subr.bf16.mxu0 0
  %351 = vmatpush1.bf16.msra.mxu0 0
  %352 = vmatprep.subr.bf16.mxu0 0
  %353 = vmatpush1.bf16.msra.mxu0 0
  %354 = vmatprep.mubr.bf16.mxu0 0
  %355 = vmatmul.mubr.bf16.gmra.mrb[0].mxu0 %v320
  %v356 = vpop.f32.mrb[0].mxu0
  %v357 = vadd.f32 %v308, %v356
  %v358 = vpop.f32.mrb[0].mxu0
  %v359 = vpop.f32.mrb[0].mxu0
  %v360 = vpop.f32.mrb[0].mxu0
  %361 = vdwg.mxu0
  %s362 = scalar_lea.vmem %s0, 16
  %v363 = vld [vmem:[%s362] sm:$0xff]
  %v365 = vunpack.c.l.b16 %v363
  %v366 = vunpack.c.h.b16 %v363
  %v367 = vpack.c.b16 %v365, %v365
  %v368 = vpack.c.b16 %v366, %v366
  %v371 = vsel %vm155, %v368, 0
  %373 = vmatprep.subr.bf16.mxu0 0
  %374 = vmatpush1.bf16.msra.mxu0 %v128
  %375 = vmatprep.subr.bf16.mxu0 0
  %376 = vmatpush1.bf16.msra.mxu0 %v129
  %377 = vmatprep.subr.bf16.mxu0 0
  %378 = vmatpush1.bf16.msra.mxu0 %v130
  %379 = vmatprep.subr.bf16.mxu0 0
  %380 = vmatpush1.bf16.msra.mxu0 %v131
  %381 = vmatprep.subr.bf16.mxu0 0
  %382 = vmatpush1.bf16.msra.mxu0 %v132
  %383 = vmatprep.subr.bf16.mxu0 0
  %384 = vmatpush1.bf16.msra.mxu0 %v133
  %385 = vmatprep.subr.bf16.mxu0 0
  %386 = vmatpush1.bf16.msra.mxu0 %v134
  %387 = vmatprep.subr.bf16.mxu0 0
  %388 = vmatpush1.bf16.msra.mxu0 %v135
  %389 = vmatprep.subr.bf16.mxu0 0
  %390 = vmatpush1.bf16.msra.mxu0 %v136
  %391 = vmatprep.subr.bf16.mxu0 0
  %392 = vmatpush1.bf16.msra.mxu0 %v137
  %393 = vmatprep.subr.bf16.mxu0 0
  %394 = vmatpush1.bf16.msra.mxu0 %v138
  %395 = vmatprep.subr.bf16.mxu0 0
  %396 = vmatpush1.bf16.msra.mxu0 %v139
  %397 = vmatprep.subr.bf16.mxu0 0
  %398 = vmatpush1.bf16.msra.mxu0 %v140
  %399 = vmatprep.subr.bf16.mxu0 0
  %400 = vmatpush1.bf16.msra.mxu0 %v161
  %401 = vmatprep.subr.bf16.mxu0 0
  %402 = vmatpush1.bf16.msra.mxu0 0
  %403 = vmatprep.subr.bf16.mxu0 0
  %404 = vmatpush1.bf16.msra.mxu0 0
  %405 = vmatprep.mubr.bf16.mxu0 %v371
  %406 = vmatmul.mubr.bf16.gmra.mrb[0].mxu0 %v367
  %v407 = vpop.f32.mrb[0].mxu0
  %v408 = vadd.f32 %v66, %v407
  %v409 = vpop.f32.mrb[0].mxu0
  %v410 = vpop.f32.mrb[0].mxu0
  %v411 = vpop.f32.mrb[0].mxu0
  %412 = vdwg.mxu0
  %v413 = vmax.f32 %v408, 0.0
  %v414 = vpack.c.bf16 %v413, %v413
  %s415 = scalar_lea.vmem %s3, 16
  %v416 = vld [vmem:[%s415] sm:$0xf]
  %v417 = vld [vmem:[%s415 + $0x4] sm:$0xf]
  %v420 = vunpack.c.l.b16 %v416
  %v421 = vunpack.c.l.b16 %v417
  %v422 = vpack.c.b16 %v421, %v420
  %v425 = vsel %vm269, %v414, 0
  %427 = vmatprep.subr.bf16.mxu0 0
  %428 = vmatpush1.bf16.msra.mxu0 %v422
  %429 = vmatprep.subr.bf16.mxu0 0
  %430 = vmatpush1.bf16.msra.mxu0 0
  %431 = vmatprep.subr.bf16.mxu0 0
  %432 = vmatpush1.bf16.msra.mxu0 0
  %433 = vmatprep.subr.bf16.mxu0 0
  %434 = vmatpush1.bf16.msra.mxu0 0
  %435 = vmatprep.subr.bf16.mxu0 0
  %436 = vmatpush1.bf16.msra.mxu0 0
  %437 = vmatprep.subr.bf16.mxu0 0
  %438 = vmatpush1.bf16.msra.mxu0 0
  %439 = vmatprep.subr.bf16.mxu0 0
  %440 = vmatpush1.bf16.msra.mxu0 0
  %441 = vmatprep.subr.bf16.mxu0 0
  %442 = vmatpush1.bf16.msra.mxu0 0
  %443 = vmatprep.subr.bf16.mxu0 0
  %444 = vmatpush1.bf16.msra.mxu0 0
  %445 = vmatprep.subr.bf16.mxu0 0
  %446 = vmatpush1.bf16.msra.mxu0 0
  %447 = vmatprep.subr.bf16.mxu0 0
  %448 = vmatpush1.bf16.msra.mxu0 0
  %449 = vmatprep.subr.bf16.mxu0 0
  %450 = vmatpush1.bf16.msra.mxu0 0
  %451 = vmatprep.subr.bf16.mxu0 0
  %452 = vmatpush1.bf16.msra.mxu0 0
  %453 = vmatprep.subr.bf16.mxu0 0
  %454 = vmatpush1.bf16.msra.mxu0 0
  %455 = vmatprep.subr.bf16.mxu0 0
  %456 = vmatpush1.bf16.msra.mxu0 0
  %457 = vmatprep.subr.bf16.mxu0 0
  %458 = vmatpush1.bf16.msra.mxu0 0
  %459 = vmatprep.mubr.bf16.mxu0 0
  %460 = vmatmul.mubr.bf16.gmra.mrb[0].mxu0 %v425
  %v461 = vpop.f32.mrb[0].mxu0
  %v462 = vadd.f32 0.0, %v461
  %v463 = vpop.f32.mrb[0].mxu0
  %v464 = vpop.f32.mrb[0].mxu0
  %v465 = vpop.f32.mrb[0].mxu0
  %466 = vdwg.mxu0
  %v467 = vadd.f32 %v357, %v462
  %s468 = scalar_lea.vmem %s0, 24
  %v469 = vld [vmem:[%s468] sm:$0xff]
  %v471 = vunpack.c.l.b16 %v469
  %v472 = vunpack.c.h.b16 %v469
  %v473 = vpack.c.b16 %v471, %v471
  %v474 = vpack.c.b16 %v472, %v472
  %v477 = vsel %vm155, %v474, 0
  %479 = vmatprep.subr.bf16.mxu0 0
  %480 = vmatpush1.bf16.msra.mxu0 %v128
  %481 = vmatprep.subr.bf16.mxu0 0
  %482 = vmatpush1.bf16.msra.mxu0 %v129
  %483 = vmatprep.subr.bf16.mxu0 0
  %484 = vmatpush1.bf16.msra.mxu0 %v130
  %485 = vmatprep.subr.bf16.mxu0 0
  %486 = vmatpush1.bf16.msra.mxu0 %v131
  %487 = vmatprep.subr.bf16.mxu0 0
  %488 = vmatpush1.bf16.msra.mxu0 %v132
  %489 = vmatprep.subr.bf16.mxu0 0
  %490 = vmatpush1.bf16.msra.mxu0 %v133
  %491 = vmatprep.subr.bf16.mxu0 0
  %492 = vmatpush1.bf16.msra.mxu0 %v134
  %493 = vmatprep.subr.bf16.mxu0 0
  %494 = vmatpush1.bf16.msra.mxu0 %v135
  %495 = vmatprep.subr.bf16.mxu0 0
  %496 = vmatpush1.bf16.msra.mxu0 %v136
  %497 = vmatprep.subr.bf16.mxu0 0
  %498 = vmatpush1.bf16.msra.mxu0 %v137
  %499 = vmatprep.subr.bf16.mxu0 0
  %500 = vmatpush1.bf16.msra.mxu0 %v138
  %501 = vmatprep.subr.bf16.mxu0 0
  %502 = vmatpush1.bf16.msra.mxu0 %v139
  %503 = vmatprep.subr.bf16.mxu0 0
  %504 = vmatpush1.bf16.msra.mxu0 %v140
  %505 = vmatprep.subr.bf16.mxu0 0
  %506 = vmatpush1.bf16.msra.mxu0 %v161
  %507 = vmatprep.subr.bf16.mxu0 0
  %508 = vmatpush1.bf16.msra.mxu0 0
  %509 = vmatprep.subr.bf16.mxu0 0
  %510 = vmatpush1.bf16.msra.mxu0 0
  %511 = vmatprep.mubr.bf16.mxu0 %v477
  %512 = vmatmul.mubr.bf16.gmra.mrb[0].mxu0 %v473
  %v513 = vpop.f32.mrb[0].mxu0
  %v514 = vadd.f32 %v66, %v513
  %v515 = vpop.f32.mrb[0].mxu0
  %v516 = vpop.f32.mrb[0].mxu0
  %v517 = vpop.f32.mrb[0].mxu0
  %518 = vdwg.mxu0
  %v519 = vmax.f32 %v514, 0.0
  %v520 = vpack.c.bf16 %v519, %v519
  %s521 = scalar_lea.vmem %s3, 24
  %v522 = vld [vmem:[%s521] sm:$0xf]
  %v523 = vld [vmem:[%s521 + $0x4] sm:$0xf]
  %v526 = vunpack.c.l.b16 %v522
  %v527 = vunpack.c.l.b16 %v523
  %v528 = vpack.c.b16 %v527, %v526
  %v531 = vsel %vm269, %v520, 0
  %533 = vmatprep.subr.bf16.mxu0 0
  %534 = vmatpush1.bf16.msra.mxu0 %v528
  %535 = vmatprep.subr.bf16.mxu0 0
  %536 = vmatpush1.bf16.msra.mxu0 0
  %537 = vmatprep.subr.bf16.mxu0 0
  %538 = vmatpush1.bf16.msra.mxu0 0
  %539 = vmatprep.subr.bf16.mxu0 0
  %540 = vmatpush1.bf16.msra.mxu0 0
  %541 = vmatprep.subr.bf16.mxu0 0
  %542 = vmatpush1.bf16.msra.mxu0 0
  %543 = vmatprep.subr.bf16.mxu0 0
  %544 = vmatpush1.bf16.msra.mxu0 0
  %545 = vmatprep.subr.bf16.mxu0 0
  %546 = vmatpush1.bf16.msra.mxu0 0
  %547 = vmatprep.subr.bf16.mxu0 0
  %548 = vmatpush1.bf16.msra.mxu0 0
  %549 = vmatprep.subr.bf16.mxu0 0
  %550 = vmatpush1.bf16.msra.mxu0 0
  %551 = vmatprep.subr.bf16.mxu0 0
  %552 = vmatpush1.bf16.msra.mxu0 0
  %553 = vmatprep.subr.bf16.mxu0 0
  %554 = vmatpush1.bf16.msra.mxu0 0
  %555 = vmatprep.subr.bf16.mxu0 0
  %556 = vmatpush1.bf16.msra.mxu0 0
  %557 = vmatprep.subr.bf16.mxu0 0
  %558 = vmatpush1.bf16.msra.mxu0 0
  %559 = vmatprep.subr.bf16.mxu0 0
  %560 = vmatpush1.bf16.msra.mxu0 0
  %561 = vmatprep.subr.bf16.mxu0 0
  %562 = vmatpush1.bf16.msra.mxu0 0
  %563 = vmatprep.subr.bf16.mxu0 0
  %564 = vmatpush1.bf16.msra.mxu0 0
  %565 = vmatprep.mubr.bf16.mxu0 0
  %566 = vmatmul.mubr.bf16.gmra.mrb[0].mxu0 %v531
  %v567 = vpop.f32.mrb[0].mxu0
  %v568 = vadd.f32 0.0, %v567
  %v569 = vpop.f32.mrb[0].mxu0
  %v570 = vpop.f32.mrb[0].mxu0
  %v571 = vpop.f32.mrb[0].mxu0
  %572 = vdwg.mxu0
  %v573 = vadd.f32 %v467, %v568
  %v574 = vld [vmem:[%s4] sm:$0x1]
  %v576 = vlaneseq
  %v577 = vshrl.u32 %v576, 7
  %v578 = vsub.s32 0, %v577
  %v579 = vrot.slane %v574, %v578
  %v581 = vadd.f32 %v573, %v579
  %v582 = vmax.f32 %v581, 0.0
  %v583 = vpack.c.bf16 %v582, %v582
  %v584 = vld [vmem:[%s5] sm:$0xf]
  %v585 = vld [vmem:[%s5 + $0x4] sm:$0xf]
  %v586 = vld [vmem:[%s5 + $0x8] sm:$0xf]
  %v587 = vld [vmem:[%s5 + $0xc] sm:$0xf]
  %v588 = vld [vmem:[%s5 + $0x10] sm:$0xf]
  %v589 = vld [vmem:[%s5 + $0x14] sm:$0xf]
  %v590 = vld [vmem:[%s5 + $0x18] sm:$0xf]
  %v591 = vld [vmem:[%s5 + $0x1c] sm:$0xf]
  %v592 = vld [vmem:[%s5 + $0x20] sm:$0xf]
  %v593 = vld [vmem:[%s5 + $0x24] sm:$0xf]
  %v594 = vld [vmem:[%s5 + $0x28] sm:$0xf]
  %v595 = vld [vmem:[%s5 + $0x2c] sm:$0xf]
  %v596 = vld [vmem:[%s5 + $0x30] sm:$0xf]
  %v597 = vld [vmem:[%s5 + $0x34] sm:$0xf]
  %v598 = vld [vmem:[%s5 + $0x38] sm:$0xf]
  %v599 = vld [vmem:[%s5 + $0x3c] sm:$0xf]
  %v600 = vld [vmem:[%s6] sm:$0x1]
  %v602 = vlaneseq
  %v603 = vshrl.u32 %v602, 7
  %v604 = vsub.s32 0, %v603
  %v605 = vrot.slane %v600, %v604
  %v623 = vunpack.c.l.b16 %v584
  %v624 = vunpack.c.l.b16 %v585
  %v625 = vunpack.c.l.b16 %v586
  %v626 = vunpack.c.l.b16 %v587
  %v627 = vunpack.c.l.b16 %v588
  %v628 = vunpack.c.l.b16 %v589
  %v629 = vunpack.c.l.b16 %v590
  %v630 = vunpack.c.l.b16 %v591
  %v631 = vunpack.c.l.b16 %v592
  %v632 = vunpack.c.l.b16 %v593
  %v633 = vunpack.c.l.b16 %v594
  %v634 = vunpack.c.l.b16 %v595
  %v635 = vunpack.c.l.b16 %v596
  %v636 = vunpack.c.l.b16 %v597
  %v637 = vunpack.c.l.b16 %v598
  %v638 = vunpack.c.l.b16 %v599
  %v639 = vpack.c.b16 %v624, %v623
  %v640 = vpack.c.b16 %v626, %v625
  %v641 = vpack.c.b16 %v628, %v627
  %v642 = vpack.c.b16 %v630, %v629
  %v643 = vpack.c.b16 %v632, %v631
  %v644 = vpack.c.b16 %v634, %v633
  %v645 = vpack.c.b16 %v636, %v635
  %v646 = vpack.c.b16 %v638, %v637
  %655 = vmatprep.subr.bf16.mxu0 0
  %656 = vmatpush1.bf16.msra.mxu0 %v639
  %657 = vmatprep.subr.bf16.mxu0 0
  %658 = vmatpush1.bf16.msra.mxu0 %v640
  %659 = vmatprep.subr.bf16.mxu0 0
  %660 = vmatpush1.bf16.msra.mxu0 %v641
  %661 = vmatprep.subr.bf16.mxu0 0
  %662 = vmatpush1.bf16.msra.mxu0 %v642
  %663 = vmatprep.subr.bf16.mxu0 0
  %664 = vmatpush1.bf16.msra.mxu0 %v643
  %665 = vmatprep.subr.bf16.mxu0 0
  %666 = vmatpush1.bf16.msra.mxu0 %v644
  %667 = vmatprep.subr.bf16.mxu0 0
  %668 = vmatpush1.bf16.msra.mxu0 %v645
  %669 = vmatprep.subr.bf16.mxu0 0
  %670 = vmatpush1.bf16.msra.mxu0 %v646
  %671 = vmatprep.subr.bf16.mxu0 0
  %672 = vmatpush1.bf16.msra.mxu0 0
  %673 = vmatprep.subr.bf16.mxu0 0
  %674 = vmatpush1.bf16.msra.mxu0 0
  %675 = vmatprep.subr.bf16.mxu0 0
  %676 = vmatpush1.bf16.msra.mxu0 0
  %677 = vmatprep.subr.bf16.mxu0 0
  %678 = vmatpush1.bf16.msra.mxu0 0
  %679 = vmatprep.subr.bf16.mxu0 0
  %680 = vmatpush1.bf16.msra.mxu0 0
  %681 = vmatprep.subr.bf16.mxu0 0
  %682 = vmatpush1.bf16.msra.mxu0 0
  %683 = vmatprep.subr.bf16.mxu0 0
  %684 = vmatpush1.bf16.msra.mxu0 0
  %685 = vmatprep.subr.bf16.mxu0 0
  %686 = vmatpush1.bf16.msra.mxu0 0
  %687 = vmatprep.mubr.bf16.mxu0 0
  %688 = vmatmul.mubr.bf16.gmra.mrb[0].mxu0 %v583
  %v689 = vpop.f32.mrb[0].mxu0
  %v690 = vadd.f32 %v605, %v689
  %v691 = vpop.f32.mrb[0].mxu0
  %v692 = vpop.f32.mrb[0].mxu0
  %v693 = vpop.f32.mrb[0].mxu0
  %694 = vdwg.mxu0
  %v695 = vmax.f32 %v690, 0.0
  %v696 = vpack.c.bf16 %v695, %v695
  %v697 = vld [vmem:[%s7] sm:$0xf]
  %v698 = vld [vmem:[%s7 + $0x4] sm:$0xf]
  %v699 = vld [vmem:[%s7 + $0x8] sm:$0xf]
  %v700 = vld [vmem:[%s7 + $0xc] sm:$0xf]
  %v701 = vld [vmem:[%s7 + $0x10] sm:$0xf]
  %v702 = vld [vmem:[%s7 + $0x14] sm:$0xf]
  %v703 = vld [vmem:[%s7 + $0x18] sm:$0xf]
  %v704 = vld [vmem:[%s7 + $0x1c] sm:$0xf]
  %v705 = vld [vmem:[%s7 + $0x20] sm:$0xf]
  %v706 = vld [vmem:[%s7 + $0x24] sm:$0xf]
  %v707 = vld [vmem:[%s7 + $0x28] sm:$0xf]
  %v708 = vld [vmem:[%s7 + $0x2c] sm:$0xf]
  %v709 = vld [vmem:[%s7 + $0x30] sm:$0xf]
  %v710 = vld [vmem:[%s7 + $0x34] sm:$0xf]
  %v711 = vld [vmem:[%s7 + $0x38] sm:$0xf]
  %v712 = vld [vmem:[%s7 + $0x3c] sm:$0xf]
  %v713 = vld [vmem:[%s8] sm:$0x1]
  %v715 = vlaneseq
  %v716 = vshrl.u32 %v715, 7
  %v717 = vsub.s32 0, %v716
  %v718 = vrot.slane %v713, %v717
  %v736 = vunpack.c.l.b16 %v697
  %v737 = vunpack.c.l.b16 %v698
  %v738 = vunpack.c.l.b16 %v699
  %v739 = vunpack.c.l.b16 %v700
  %v740 = vunpack.c.l.b16 %v701
  %v741 = vunpack.c.l.b16 %v702
  %v742 = vunpack.c.l.b16 %v703
  %v743 = vunpack.c.l.b16 %v704
  %v744 = vunpack.c.l.b16 %v705
  %v745 = vunpack.c.l.b16 %v706
  %v746 = vunpack.c.l.b16 %v707
  %v747 = vunpack.c.l.b16 %v708
  %v748 = vunpack.c.l.b16 %v709
  %v749 = vunpack.c.l.b16 %v710
  %v750 = vunpack.c.l.b16 %v711
  %v751 = vunpack.c.l.b16 %v712
  %v752 = vpack.c.b16 %v737, %v736
  %v753 = vpack.c.b16 %v739, %v738
  %v754 = vpack.c.b16 %v741, %v740
  %v755 = vpack.c.b16 %v743, %v742
  %v756 = vpack.c.b16 %v745, %v744
  %v757 = vpack.c.b16 %v747, %v746
  %v758 = vpack.c.b16 %v749, %v748
  %v759 = vpack.c.b16 %v751, %v750
  %768 = vmatprep.subr.bf16.mxu0 0
  %769 = vmatpush1.bf16.msra.mxu0 %v752
  %770 = vmatprep.subr.bf16.mxu0 0
  %771 = vmatpush1.bf16.msra.mxu0 %v753
  %772 = vmatprep.subr.bf16.mxu0 0
  %773 = vmatpush1.bf16.msra.mxu0 %v754
  %774 = vmatprep.subr.bf16.mxu0 0
  %775 = vmatpush1.bf16.msra.mxu0 %v755
  %776 = vmatprep.subr.bf16.mxu0 0
  %777 = vmatpush1.bf16.msra.mxu0 %v756
  %778 = vmatprep.subr.bf16.mxu0 0
  %779 = vmatpush1.bf16.msra.mxu0 %v757
  %780 = vmatprep.subr.bf16.mxu0 0
  %781 = vmatpush1.bf16.msra.mxu0 %v758
  %782 = vmatprep.subr.bf16.mxu0 0
  %783 = vmatpush1.bf16.msra.mxu0 %v759
  %784 = vmatprep.subr.bf16.mxu0 0
  %785 = vmatpush1.bf16.msra.mxu0 0
  %786 = vmatprep.subr.bf16.mxu0 0
  %787 = vmatpush1.bf16.msra.mxu0 0
  %788 = vmatprep.subr.bf16.mxu0 0
  %789 = vmatpush1.bf16.msra.mxu0 0
  %790 = vmatprep.subr.bf16.mxu0 0
  %791 = vmatpush1.bf16.msra.mxu0 0
  %792 = vmatprep.subr.bf16.mxu0 0
  %793 = vmatpush1.bf16.msra.mxu0 0
  %794 = vmatprep.subr.bf16.mxu0 0
  %795 = vmatpush1.bf16.msra.mxu0 0
  %796 = vmatprep.subr.bf16.mxu0 0
  %797 = vmatpush1.bf16.msra.mxu0 0
  %798 = vmatprep.subr.bf16.mxu0 0
  %799 = vmatpush1.bf16.msra.mxu0 0
  %800 = vmatprep.mubr.bf16.mxu0 0
  %801 = vmatmul.mubr.bf16.gmra.mrb[0].mxu0 %v696
  %v802 = vpop.f32.mrb[0].mxu0
  %v803 = vadd.f32 %v718, %v802
  %v804 = vpop.f32.mrb[0].mxu0
  %v805 = vpop.f32.mrb[0].mxu0
  %v806 = vpop.f32.mrb[0].mxu0
  %807 = vdwg.mxu0
  %808 = vst [vmem:[%s9] sm:$0xff] %v803
  // Predicated region
  $region38: #{_forward_impl.3} parent=0 // pred_check
    _
  $region39: #{_forward_impl.3} parent=0 // pred_check_branch
    %810 = sbr.rel (0) target = $region41
  $region40: #{_forward_impl.3} parent=0 // pred_region
    _
  $region41: #{_forward_impl.3} parent=0 // pred_fallthru
    _
  // Predicated region
  $region42: #{_forward_impl.3} parent=0 // pred_check
    _
  $region43: #{_forward_impl.3} parent=0 // pred_check_branch
    %812 = sbr.rel (0) target = $region45
  $region44: #{_forward_impl.3} parent=0 // pred_region
    _
  $region45: #{_forward_impl.3} parent=0 // pred_fallthru
    _

</llo_original>
